<compile_context>
chip_gen: v5e
topology: v5e:2x2
jax: 0.10.0
libtpu: 0.0.40
codegen_flags: <defaults>
</compile_context>

<pallas_src>
import math

import jax
import jax.numpy as jnp
from jax import lax
from jax.experimental import pallas as pl
from jax.experimental.pallas import tpu as pltpu

# --- config (mca hyper-params, small synthetic sizes) ---
H = 32            # mca_HIDDEN_SIZE
NH = 4            # mca_MULTI_HEAD
DH = H // NH      # mca_HIDDEN_SIZE_HEAD
FF = 64           # mca_FF_SIZE
EPS = 1e-6        # LayerNorm eps
NEG_INF = -1e9


# ------------------------- in-kernel helpers -------------------------

def _ln(v, g, b):
    """LayerNorm matching mca.py (torch.std is unbiased, eps added to std).

    Reciprocal-multiply form: one exact divide on the (T,1) keepdims tensor.
    """
    mean = jnp.mean(v, axis=-1, keepdims=True)
    c = v - mean
    var = jnp.sum(c * c, axis=-1, keepdims=True) * (1.0 / (v.shape[-1] - 1))
    inv = 1.0 / (jnp.sqrt(var) + EPS)
    return g * c * inv + b


def _attention(q, k, v, add_mask, wm, bm):
    """Multi-head attention on token-major (T, H) projections.

    q: (Tq, H), k/v: (Tk, H), add_mask: (Tq, Tk) additive (0 / -1e9),
    wm: (H, H) merge weight, bm: (1, H) merge bias.
    Short unrolled loop over NH=4 heads; all ops are 2-D.
    """
    q = q * (1.0 / math.sqrt(DH))          # fold score scale into q once
    o_heads = []
    for n in range(NH):
        sl = slice(n * DH, (n + 1) * DH)
        # scores: (Tq, DH) x (Tk, DH)^T contraction expressed directly.
        s = lax.dot_general(q[:, sl], k[:, sl], (((1,), (1,)), ((), ())),
                            preferred_element_type=jnp.float32)
        s = s + add_mask
        s = s - jnp.max(s, axis=-1, keepdims=True)
        p = jnp.exp(s)
        p = p * (1.0 / jnp.sum(p, axis=-1, keepdims=True))   # exact recip, then mul
        # TODO(synk): attention-map dropout treated as identity (eval mode).
        o_heads.append(jnp.dot(p, v[:, sl], preferred_element_type=jnp.float32))
    o = jnp.concatenate(o_heads, axis=-1)                     # (Tq, H) token-major
    return jnp.dot(o, wm, preferred_element_type=jnp.float32) + bm


# ------------------------- fused Pallas kernel -------------------------
#
# Weight slab (160, 128):
#   rows   0: 32  -> [Wq1 | Wk1 | Wv1 | Wm1]
#   rows  32: 64  -> [Wq2 | Wk2 | Wv2 | Wm2]
#   rows  64: 96  -> Wff1 in lanes 0:64
#   rows  96:160  -> Wff2 in lanes 0:32
# Vector slab (13, 128), lane offset 0 on every row:
#   0:[bq1|bk1|bv1]  1:bm1  2:bq2  3:[bk2|bv2]  4:bm2  5:bff1  6:bff2
#   7:g1 8:b1 9:g2 10:b2 11:g3 12:b3
# Mask slab (2*Tx, max(Tx,Ty)):
#   rows 0:Tx   -> self-attention additive mask (Tx, Tx)
#   rows Tx:2Tx -> cross-attention additive mask (Tx, Ty)

def _sga_kernel(x_ref, y_ref, mask_ref, w_ref, vec_ref, out_ref):
    Tx = x_ref.shape[0]
    Ty = y_ref.shape[0]

    x = x_ref[...]                                   # (Tx, H)  batch-folded tokens
    y = y_ref[...]                                   # (Ty, H)

    m_self = mask_ref[0:Tx, 0:Tx]                    # (Tx, Tx) additive
    m_cross = mask_ref[Tx:2 * Tx, 0:Ty]              # (Tx, Ty) additive

    # --- block 1: x = norm1(x + SelfAtt(x)) ---
    qkv = jnp.dot(x, w_ref[0:H, 0:3 * H],
                  preferred_element_type=jnp.float32) + vec_ref[0:1, 0:3 * H]
    sa = _attention(qkv[:, 0:H], qkv[:, H:2 * H], qkv[:, 2 * H:3 * H], m_self,
                    w_ref[0:H, 3 * H:4 * H], vec_ref[1:2, 0:H])
    # TODO(synk): residual dropout treated as identity (eval mode).
    x = _ln(x + sa, vec_ref[7:8, 0:H], vec_ref[8:9, 0:H])

    # --- block 2: x = norm2(x + CrossAtt(q=x, k=v=y)) ---
    q2 = jnp.dot(x, w_ref[H:2 * H, 0:H],
                 preferred_element_type=jnp.float32) + vec_ref[2:3, 0:H]
    kv2 = jnp.dot(y, w_ref[H:2 * H, H:3 * H],
                  preferred_element_type=jnp.float32) + vec_ref[3:4, 0:2 * H]
    ca = _attention(q2, kv2[:, 0:H], kv2[:, H:2 * H], m_cross,
                    w_ref[H:2 * H, 3 * H:4 * H], vec_ref[4:5, 0:H])
    x = _ln(x + ca, vec_ref[9:10, 0:H], vec_ref[10:11, 0:H])

    # --- block 3: x = norm3(x + FFN(x)) ---
    h = jnp.dot(x, w_ref[2 * H:3 * H, 0:FF],
                preferred_element_type=jnp.float32) + vec_ref[5:6, 0:FF]
    h = jnp.maximum(h, 0.0)
    f = jnp.dot(h, w_ref[3 * H:3 * H + FF, 0:H],
                preferred_element_type=jnp.float32) + vec_ref[6:7, 0:H]
    out_ref[...] = _ln(x + f, vec_ref[11:12, 0:H], vec_ref[12:13, 0:H])


# ------------------------- wrapper-side packing -------------------------

def _pack_weights(params):
    def att_block(p):                                    # (H, 4H)
        return jnp.concatenate([p["wq"], p["wk"], p["wv"], p["wm"]], axis=1)
    w_att = jnp.concatenate([att_block(params["att1"]),
                             att_block(params["att2"])], axis=0)          # (2H, 128)
    w_ff1 = jnp.pad(params["ffn"]["w1"], ((0, 0), (0, 4 * H - FF)))       # (H, 128)
    w_ff2 = jnp.pad(params["ffn"]["w2"], ((0, 0), (0, 4 * H - H)))        # (FF, 128)
    return jnp.concatenate([w_att, w_ff1, w_ff2], axis=0)                 # (160, 128)


def _pack_vectors(params):
    def row(vals):
        v = jnp.concatenate(vals, axis=-1).reshape(1, -1)
        return jnp.pad(v, ((0, 0), (0, 4 * H - v.shape[-1])))
    a1, a2, ffn = params["att1"], params["att2"], params["ffn"]
    rows = [
        row([a1["bq"], a1["bk"], a1["bv"]]),      # 0
        row([a1["bm"]]),                          # 1
        row([a2["bq"]]),                          # 2
        row([a2["bk"], a2["bv"]]),                # 3
        row([a2["bm"]]),                          # 4
        row([ffn["b1"]]),                         # 5
        row([ffn["b2"]]),                         # 6
        row([params["ln1"]["g"]]), row([params["ln1"]["b"]]),   # 7, 8
        row([params["ln2"]["g"]]), row([params["ln2"]["b"]]),   # 9, 10
        row([params["ln3"]["g"]]), row([params["ln3"]["b"]]),   # 11, 12
    ]
    return jnp.concatenate(rows, axis=0)          # (13, 128)


def _additive_block_mask(key_mask, B, Lq, Lk):
    """(B,1,Lk) key mask (1 = masked) -> (B*Lq, B*Lk) additive mask.

    -1e9 on masked keys and on all cross-batch (query, key) pairs.
    """
    km = key_mask.reshape(B, Lk).astype(jnp.float32)
    diff_batch = 1.0 - jnp.eye(B, dtype=jnp.float32)               # (Bq, Bk)
    masked = jnp.maximum(diff_batch[:, None, :, None], km[None, None, :, :])
    masked = jnp.broadcast_to(masked, (B, Lq, B, Lk))
    return NEG_INF * masked.reshape(B * Lq, B * Lk)


def sga_forward(x, y, params, x_mask=None, y_mask=None):
    """SGA.forward: x <- norm1(x + SA(x)); x <- norm2(x + CA(x, y)); x <- norm3(x + FFN(x))."""
    B, Lx, _ = x.shape
    _, Ly, _ = y.shape
    Tx, Ty = B * Lx, B * Ly

    xm = (jnp.zeros((B, 1, Lx), jnp.float32) if x_mask is None
          else x_mask.astype(jnp.float32).reshape(B, 1, Lx))
    ym = (jnp.zeros((B, 1, Ly), jnp.float32) if y_mask is None
          else y_mask.astype(jnp.float32).reshape(B, 1, Ly))

    # Precomputed additive masks (0 / -1e9), packed into one slab.
    self_add = _additive_block_mask(xm, B, Lx, Lx)                  # (Tx, Tx)
    cross_add = _additive_block_mask(ym, B, Lx, Ly)                 # (Tx, Ty)
    max_t = max(Tx, Ty)
    mask_slab = jnp.zeros((2 * Tx, max_t), jnp.float32)
    mask_slab = mask_slab.at[0:Tx, 0:Tx].set(self_add)
    mask_slab = mask_slab.at[Tx:2 * Tx, 0:Ty].set(cross_add)

    w_slab = _pack_weights(params)                                  # (160, 128)
    vec_slab = _pack_vectors(params)                                # (13, 128)

    xf = x.reshape(Tx, H)                                           # fold batch
    yf = y.reshape(Ty, H)

    # Everything fits comfortably in VMEM; whole-array blocks, no grid.
    # (On v7x, a CORE_PARALLEL split over batch could be benchmarked, but the
    #  folded single-step version is the recommended default for this size.)
    vmem = pl.BlockSpec(memory_space=pltpu.MemorySpace.VMEM)
    out = pl.pallas_call(
        _sga_kernel,
        out_shape=jax.ShapeDtypeStruct((Tx, H), jnp.float32),
        in_specs=[vmem, vmem, vmem, vmem, vmem],
        out_specs=vmem,
    )(xf, yf, mask_slab, w_slab, vec_slab)
    return out.reshape(B, Lx, H)


# ------------------------- pure-JAX reference (for verification) -------------------------

def _ref_layer_norm(v, g, b):
    mean = jnp.mean(v, axis=-1, keepdims=True)
    var = jnp.sum((v - mean) ** 2, axis=-1, keepdims=True) / (v.shape[-1] - 1)
    std = jnp.sqrt(var)
    return g * (v - mean) / (std + EPS) + b


def _ref_mhatt(q_in, kv_in, mask, p):
    B, Lq, _ = q_in.shape
    Lk = kv_in.shape[1]
    q = q_in @ p["wq"] + p["bq"]
    k = kv_in @ p["wk"] + p["bk"]
    v = kv_in @ p["wv"] + p["bv"]
    qh = q.reshape(B, Lq, NH, DH).transpose(0, 2, 1, 3)
    kh = k.reshape(B, Lk, NH, DH).transpose(0, 2, 1, 3)
    vh = v.reshape(B, Lk, NH, DH).transpose(0, 2, 1, 3)
    s = jnp.einsum("bhqd,bhkd->bhqk", qh, kh) / math.sqrt(DH)
    s = jnp.where(mask[:, None, :, :] > 0.5, -1e9, s)   # mask (B,1,Lk) -> (B,1,1,Lk)
    a = jax.nn.softmax(s, axis=-1)
    o = jnp.einsum("bhqk,bhkd->bhqd", a, vh)
    o = o.transpose(0, 2, 1, 3).reshape(B, Lq, H)
    return o @ p["wm"] + p["bm"]


def _ref_sga(x, y, params, xm, ym):
    x = _ref_layer_norm(x + _ref_mhatt(x, x, xm, params["att1"]),
                        params["ln1"]["g"], params["ln1"]["b"])
    x = _ref_layer_norm(x + _ref_mhatt(x, y, ym, params["att2"]),
                        params["ln2"]["g"], params["ln2"]["b"])
    h = jnp.maximum(x @ params["ffn"]["w1"] + params["ffn"]["b1"], 0.0)
    f = h @ params["ffn"]["w2"] + params["ffn"]["b2"]
    x = _ref_layer_norm(x + f, params["ln3"]["g"], params["ln3"]["b"])
    return x


# ------------------------- parameter init -------------------------

def _init_params(key):
    def linear(k, fin, fout):
        k1, k2 = jax.random.split(k)
        w = 0.1 * jax.random.normal(k1, (fin, fout), jnp.float32)
        b = 0.05 * jax.random.normal(k2, (1, fout), jnp.float32)
        return w, b

    keys = jax.random.split(key, 16)
    params = {}
    for name, koff in (("att1", 0), ("att2", 4)):
        wq, bq = linear(keys[koff + 0], H, H)
        wk, bk = linear(keys[koff + 1], H, H)
        wv, bv = linear(keys[koff + 2], H, H)
        wm, bm = linear(keys[koff + 3], H, H)
        params[name] = dict(wq=wq, bq=bq, wk=wk, bk=bk, wv=wv, bv=bv, wm=wm, bm=bm)
    w1, b1 = linear(keys[8], H, FF)
    w2, b2 = linear(keys[9], FF, H)
    params["ffn"] = dict(w1=w1, b1=b1, w2=w2, b2=b2)
    for name in ("ln1", "ln2", "ln3"):
        params[name] = dict(g=jnp.ones((1, H), jnp.float32),
                            b=jnp.zeros((1, H), jnp.float32))
    return params


if __name__ == "__main__":
    key = jax.random.PRNGKey(0)
    kx, ky, kp = jax.random.split(key, 3)

    B, Lx, Ly = 2, 8, 16
    x = jax.random.normal(kx, (B, Lx, H), jnp.float32)
    y = jax.random.normal(ky, (B, Ly, H), jnp.float32)
    params = _init_params(kp)

    # x_mask = None; y_mask masks the last 4 key positions of y (True => masked).
    y_mask = jnp.zeros((B, 1, Ly), jnp.bool_).at[:, :, -4:].set(True)

    out = sga_forward(x, y, params, x_mask=None, y_mask=y_mask)
    out = jax.block_until_ready(out)

    ref = _ref_sga(x, y, params,
                   jnp.zeros((B, 1, Lx), jnp.float32),
                   y_mask.astype(jnp.float32))
    err = float(jnp.max(jnp.abs(out - ref)))
    assert err < 1e-4, f"mismatch vs reference: {err}"
    print("KERNEL_OK")
</pallas_src>

<mosaic_0001>
module attributes {stable_mosaic.version = 11 : i64} {
  func.func @_sga_kernel(%arg0: memref<16x32xf32, #tpu.memory_space<vmem>>, %arg1: memref<32x32xf32, #tpu.memory_space<vmem>>, %arg2: memref<32x32xf32, #tpu.memory_space<vmem>>, %arg3: memref<160x128xf32, #tpu.memory_space<vmem>>, %arg4: memref<13x128xf32, #tpu.memory_space<vmem>>, %arg5: memref<16x32xf32, #tpu.memory_space<vmem>>) attributes {dimension_semantics = [], scalar_prefetch = 0 : i64, scratch_operands = 0 : i64, tpu.core_type = #tpu.core_type<tc>} {
    %c0 = arith.constant 0 : index
    %c0_0 = arith.constant 0 : index
    %0 = vector.load %arg0[%c0, %c0_0] : memref<16x32xf32, #tpu.memory_space<vmem>>, vector<16x32xf32>
    %c0_1 = arith.constant 0 : index
    %c0_2 = arith.constant 0 : index
    %1 = vector.load %arg1[%c0_1, %c0_2] : memref<32x32xf32, #tpu.memory_space<vmem>>, vector<32x32xf32>
    %c0_3 = arith.constant 0 : index
    %c0_4 = arith.constant 0 : index
    %2 = vector.load %arg2[%c0_3, %c0_4] : memref<32x32xf32, #tpu.memory_space<vmem>>, vector<16x16xf32>
    %c16 = arith.constant 16 : index
    %c0_5 = arith.constant 0 : index
    %3 = vector.load %arg2[%c16, %c0_5] : memref<32x32xf32, #tpu.memory_space<vmem>>, vector<16x32xf32>
    %c0_6 = arith.constant 0 : index
    %c0_7 = arith.constant 0 : index
    %4 = vector.load %arg3[%c0_6, %c0_7] : memref<160x128xf32, #tpu.memory_space<vmem>>, vector<32x96xf32>
    %cst = arith.constant dense<0.000000e+00> : vector<16x96xf32>
    %5 = tpu.matmul %0, %4, %cst {dimension_numbers = #tpu.dot_dimension_numbers<[1], [0], [0], [1], [0, 0, 1, 1], [], []>} : vector<16x32xf32>, vector<32x96xf32>, vector<16x96xf32> -> vector<16x96xf32>
    %c0_8 = arith.constant 0 : index
    %c0_9 = arith.constant 0 : index
    %6 = vector.load %arg4[%c0_8, %c0_9] : memref<13x128xf32, #tpu.memory_space<vmem>>, vector<1x96xf32>
    %7 = vector.broadcast %6 : vector<1x96xf32> to vector<16x96xf32>
    %8 = arith.addf %5, %7 : vector<16x96xf32>
    %9 = vector.extract_strided_slice %8 {offsets = [0, 0], sizes = [16, 32], strides = [1, 1]} : vector<16x96xf32> to vector<16x32xf32>
    %10 = vector.extract_strided_slice %8 {offsets = [0, 32], sizes = [16, 32], strides = [1, 1]} : vector<16x96xf32> to vector<16x32xf32>
    %11 = vector.extract_strided_slice %8 {offsets = [0, 64], sizes = [16, 32], strides = [1, 1]} : vector<16x96xf32> to vector<16x32xf32>
    %c0_10 = arith.constant 0 : index
    %c96 = arith.constant 96 : index
    %12 = vector.load %arg3[%c0_10, %c96] : memref<160x128xf32, #tpu.memory_space<vmem>>, vector<32x32xf32>
    %c1 = arith.constant 1 : index
    %c0_11 = arith.constant 0 : index
    %13 = vector.load %arg4[%c1, %c0_11] : memref<13x128xf32, #tpu.memory_space<vmem>>, vector<1x32xf32>
    %cst_12 = arith.constant 0.353553385 : f32
    %14 = vector.broadcast %cst_12 : f32 to vector<16x32xf32>
    %15 = arith.mulf %9, %14 : vector<16x32xf32>
    %16 = vector.extract_strided_slice %15 {offsets = [0, 0], sizes = [16, 8], strides = [1, 1]} : vector<16x32xf32> to vector<16x8xf32>
    %17 = vector.extract_strided_slice %10 {offsets = [0, 0], sizes = [16, 8], strides = [1, 1]} : vector<16x32xf32> to vector<16x8xf32>
    %cst_13 = arith.constant dense<0.000000e+00> : vector<16x16xf32>
    %18 = tpu.matmul %16, %17, %cst_13 {dimension_numbers = #tpu.dot_dimension_numbers<[1], [1], [0], [0], [0, 0, 1, 0], [], []>} : vector<16x8xf32>, vector<16x8xf32>, vector<16x16xf32> -> vector<16x16xf32>
    %19 = arith.addf %18, %2 : vector<16x16xf32>
    %cst_14 = arith.constant dense<0xFF800000> : vector<16xf32>
    %20 = vector.multi_reduction <maximumf>, %19, %cst_14 [1] : vector<16x16xf32> to vector<16xf32>
    %21 = vector.shape_cast %20 : vector<16xf32> to vector<16x1xf32>
    %22 = vector.broadcast %21 : vector<16x1xf32> to vector<16x16xf32>
    %23 = arith.subf %19, %22 : vector<16x16xf32>
    %24 = math.exp %23 : vector<16x16xf32>
    %cst_15 = arith.constant dense<0.000000e+00> : vector<16xf32>
    %25 = vector.multi_reduction <add>, %24, %cst_15 [1] : vector<16x16xf32> to vector<16xf32>
    %26 = vector.shape_cast %25 : vector<16xf32> to vector<16x1xf32>
    %cst_16 = arith.constant 1.000000e+00 : f32
    %27 = vector.broadcast %cst_16 : f32 to vector<16x1xf32>
    %28 = arith.divf %27, %26 : vector<16x1xf32>
    %29 = vector.broadcast %28 : vector<16x1xf32> to vector<16x16xf32>
    %30 = arith.mulf %24, %29 : vector<16x16xf32>
    %31 = vector.extract_strided_slice %11 {offsets = [0, 0], sizes = [16, 8], strides = [1, 1]} : vector<16x32xf32> to vector<16x8xf32>
    %cst_17 = arith.constant dense<0.000000e+00> : vector<16x8xf32>
    %32 = tpu.matmul %30, %31, %cst_17 {dimension_numbers = #tpu.dot_dimension_numbers<[1], [0], [0], [1], [0, 0, 1, 1], [], []>} : vector<16x16xf32>, vector<16x8xf32>, vector<16x8xf32> -> vector<16x8xf32>
    %33 = vector.extract_strided_slice %15 {offsets = [0, 8], sizes = [16, 8], strides = [1, 1]} : vector<16x32xf32> to vector<16x8xf32>
    %34 = vector.extract_strided_slice %10 {offsets = [0, 8], sizes = [16, 8], strides = [1, 1]} : vector<16x32xf32> to vector<16x8xf32>
    %cst_18 = arith.constant dense<0.000000e+00> : vector<16x16xf32>
    %35 = tpu.matmul %33, %34, %cst_18 {dimension_numbers = #tpu.dot_dimension_numbers<[1], [1], [0], [0], [0, 0, 1, 0], [], []>} : vector<16x8xf32>, vector<16x8xf32>, vector<16x16xf32> -> vector<16x16xf32>
    %36 = arith.addf %35, %2 : vector<16x16xf32>
    %cst_19 = arith.constant dense<0xFF800000> : vector<16xf32>
    %37 = vector.multi_reduction <maximumf>, %36, %cst_19 [1] : vector<16x16xf32> to vector<16xf32>
    %38 = vector.shape_cast %37 : vector<16xf32> to vector<16x1xf32>
    %39 = vector.broadcast %38 : vector<16x1xf32> to vector<16x16xf32>
    %40 = arith.subf %36, %39 : vector<16x16xf32>
    %41 = math.exp %40 : vector<16x16xf32>
    %cst_20 = arith.constant dense<0.000000e+00> : vector<16xf32>
    %42 = vector.multi_reduction <add>, %41, %cst_20 [1] : vector<16x16xf32> to vector<16xf32>
    %43 = vector.shape_cast %42 : vector<16xf32> to vector<16x1xf32>
    %cst_21 = arith.constant 1.000000e+00 : f32
    %44 = vector.broadcast %cst_21 : f32 to vector<16x1xf32>
    %45 = arith.divf %44, %43 : vector<16x1xf32>
    %46 = vector.broadcast %45 : vector<16x1xf32> to vector<16x16xf32>
    %47 = arith.mulf %41, %46 : vector<16x16xf32>
    %48 = vector.extract_strided_slice %11 {offsets = [0, 8], sizes = [16, 8], strides = [1, 1]} : vector<16x32xf32> to vector<16x8xf32>
    %cst_22 = arith.constant dense<0.000000e+00> : vector<16x8xf32>
    %49 = tpu.matmul %47, %48, %cst_22 {dimension_numbers = #tpu.dot_dimension_numbers<[1], [0], [0], [1], [0, 0, 1, 1], [], []>} : vector<16x16xf32>, vector<16x8xf32>, vector<16x8xf32> -> vector<16x8xf32>
    %50 = vector.extract_strided_slice %15 {offsets = [0, 16], sizes = [16, 8], strides = [1, 1]} : vector<16x32xf32> to vector<16x8xf32>
    %51 = vector.extract_strided_slice %10 {offsets = [0, 16], sizes = [16, 8], strides = [1, 1]} : vector<16x32xf32> to vector<16x8xf32>
    %cst_23 = arith.constant dense<0.000000e+00> : vector<16x16xf32>
    %52 = tpu.matmul %50, %51, %cst_23 {dimension_numbers = #tpu.dot_dimension_numbers<[1], [1], [0], [0], [0, 0, 1, 0], [], []>} : vector<16x8xf32>, vector<16x8xf32>, vector<16x16xf32> -> vector<16x16xf32>
    %53 = arith.addf %52, %2 : vector<16x16xf32>
    %cst_24 = arith.constant dense<0xFF800000> : vector<16xf32>
    %54 = vector.multi_reduction <maximumf>, %53, %cst_24 [1] : vector<16x16xf32> to vector<16xf32>
    %55 = vector.shape_cast %54 : vector<16xf32> to vector<16x1xf32>
    %56 = vector.broadcast %55 : vector<16x1xf32> to vector<16x16xf32>
    %57 = arith.subf %53, %56 : vector<16x16xf32>
    %58 = math.exp %57 : vector<16x16xf32>
    %cst_25 = arith.constant dense<0.000000e+00> : vector<16xf32>
    %59 = vector.multi_reduction <add>, %58, %cst_25 [1] : vector<16x16xf32> to vector<16xf32>
    %60 = vector.shape_cast %59 : vector<16xf32> to vector<16x1xf32>
    %cst_26 = arith.constant 1.000000e+00 : f32
    %61 = vector.broadcast %cst_26 : f32 to vector<16x1xf32>
    %62 = arith.divf %61, %60 : vector<16x1xf32>
    %63 = vector.broadcast %62 : vector<16x1xf32> to vector<16x16xf32>
    %64 = arith.mulf %58, %63 : vector<16x16xf32>
    %65 = vector.extract_strided_slice %11 {offsets = [0, 16], sizes = [16, 8], strides = [1, 1]} : vector<16x32xf32> to vector<16x8xf32>
    %cst_27 = arith.constant dense<0.000000e+00> : vector<16x8xf32>
    %66 = tpu.matmul %64, %65, %cst_27 {dimension_numbers = #tpu.dot_dimension_numbers<[1], [0], [0], [1], [0, 0, 1, 1], [], []>} : vector<16x16xf32>, vector<16x8xf32>, vector<16x8xf32> -> vector<16x8xf32>
    %67 = vector.extract_strided_slice %15 {offsets = [0, 24], sizes = [16, 8], strides = [1, 1]} : vector<16x32xf32> to vector<16x8xf32>
    %68 = vector.extract_strided_slice %10 {offsets = [0, 24], sizes = [16, 8], strides = [1, 1]} : vector<16x32xf32> to vector<16x8xf32>
    %cst_28 = arith.constant dense<0.000000e+00> : vector<16x16xf32>
    %69 = tpu.matmul %67, %68, %cst_28 {dimension_numbers = #tpu.dot_dimension_numbers<[1], [1], [0], [0], [0, 0, 1, 0], [], []>} : vector<16x8xf32>, vector<16x8xf32>, vector<16x16xf32> -> vector<16x16xf32>
    %70 = arith.addf %69, %2 : vector<16x16xf32>
    %cst_29 = arith.constant dense<0xFF800000> : vector<16xf32>
    %71 = vector.multi_reduction <maximumf>, %70, %cst_29 [1] : vector<16x16xf32> to vector<16xf32>
    %72 = vector.shape_cast %71 : vector<16xf32> to vector<16x1xf32>
    %73 = vector.broadcast %72 : vector<16x1xf32> to vector<16x16xf32>
    %74 = arith.subf %70, %73 : vector<16x16xf32>
    %75 = math.exp %74 : vector<16x16xf32>
    %cst_30 = arith.constant dense<0.000000e+00> : vector<16xf32>
    %76 = vector.multi_reduction <add>, %75, %cst_30 [1] : vector<16x16xf32> to vector<16xf32>
    %77 = vector.shape_cast %76 : vector<16xf32> to vector<16x1xf32>
    %cst_31 = arith.constant 1.000000e+00 : f32
    %78 = vector.broadcast %cst_31 : f32 to vector<16x1xf32>
    %79 = arith.divf %78, %77 : vector<16x1xf32>
    %80 = vector.broadcast %79 : vector<16x1xf32> to vector<16x16xf32>
    %81 = arith.mulf %75, %80 : vector<16x16xf32>
    %82 = vector.extract_strided_slice %11 {offsets = [0, 24], sizes = [16, 8], strides = [1, 1]} : vector<16x32xf32> to vector<16x8xf32>
    %cst_32 = arith.constant dense<0.000000e+00> : vector<16x8xf32>
    %83 = tpu.matmul %81, %82, %cst_32 {dimension_numbers = #tpu.dot_dimension_numbers<[1], [0], [0], [1], [0, 0, 1, 1], [], []>} : vector<16x16xf32>, vector<16x8xf32>, vector<16x8xf32> -> vector<16x8xf32>
    %84 = tpu.concatenate %32, %49, %66, %83 in 1 : vector<16x8xf32>, vector<16x8xf32>, vector<16x8xf32>, vector<16x8xf32> -> vector<16x32xf32>
    %cst_33 = arith.constant dense<0.000000e+00> : vector<16x32xf32>
    %85 = tpu.matmul %84, %12, %cst_33 {dimension_numbers = #tpu.dot_dimension_numbers<[1], [0], [0], [1], [0, 0, 1, 1], [], []>} : vector<16x32xf32>, vector<32x32xf32>, vector<16x32xf32> -> vector<16x32xf32>
    %86 = vector.broadcast %13 : vector<1x32xf32> to vector<16x32xf32>
    %87 = arith.addf %85, %86 : vector<16x32xf32>
    %88 = arith.addf %0, %87 : vector<16x32xf32>
    %c7 = arith.constant 7 : index
    %c0_34 = arith.constant 0 : index
    %89 = vector.load %arg4[%c7, %c0_34] : memref<13x128xf32, #tpu.memory_space<vmem>>, vector<1x32xf32>
    %c8 = arith.constant 8 : index
    %c0_35 = arith.constant 0 : index
    %90 = vector.load %arg4[%c8, %c0_35] : memref<13x128xf32, #tpu.memory_space<vmem>>, vector<1x32xf32>
    %cst_36 = arith.constant dense<0.000000e+00> : vector<16xf32>
    %91 = vector.multi_reduction <add>, %88, %cst_36 [1] : vector<16x32xf32> to vector<16xf32>
    %92 = vector.shape_cast %91 : vector<16xf32> to vector<16x1xf32>
    %cst_37 = arith.constant 3.200000e+01 : f32
    %93 = vector.broadcast %cst_37 : f32 to vector<16x1xf32>
    %94 = arith.divf %92, %93 : vector<16x1xf32>
    %95 = vector.broadcast %94 : vector<16x1xf32> to vector<16x32xf32>
    %96 = arith.subf %88, %95 : vector<16x32xf32>
    %97 = arith.mulf %96, %96 : vector<16x32xf32>
    %cst_38 = arith.constant dense<0.000000e+00> : vector<16xf32>
    %98 = vector.multi_reduction <add>, %97, %cst_38 [1] : vector<16x32xf32> to vector<16xf32>
    %99 = vector.shape_cast %98 : vector<16xf32> to vector<16x1xf32>
    %cst_39 = arith.constant 0.0322580636 : f32
    %100 = vector.broadcast %cst_39 : f32 to vector<16x1xf32>
    %101 = arith.mulf %99, %100 : vector<16x1xf32>
    %102 = math.sqrt %101 : vector<16x1xf32>
    %cst_40 = arith.constant 9.99999997E-7 : f32
    %103 = vector.broadcast %cst_40 : f32 to vector<16x1xf32>
    %104 = arith.addf %102, %103 : vector<16x1xf32>
    %cst_41 = arith.constant 1.000000e+00 : f32
    %105 = vector.broadcast %cst_41 : f32 to vector<16x1xf32>
    %106 = arith.divf %105, %104 : vector<16x1xf32>
    %107 = vector.broadcast %89 : vector<1x32xf32> to vector<16x32xf32>
    %108 = arith.mulf %107, %96 : vector<16x32xf32>
    %109 = vector.broadcast %106 : vector<16x1xf32> to vector<16x32xf32>
    %110 = arith.mulf %108, %109 : vector<16x32xf32>
    %111 = vector.broadcast %90 : vector<1x32xf32> to vector<16x32xf32>
    %112 = arith.addf %110, %111 : vector<16x32xf32>
    %c32 = arith.constant 32 : index
    %c0_42 = arith.constant 0 : index
    %113 = vector.load %arg3[%c32, %c0_42] : memref<160x128xf32, #tpu.memory_space<vmem>>, vector<32x32xf32>
    %cst_43 = arith.constant dense<0.000000e+00> : vector<16x32xf32>
    %114 = tpu.matmul %112, %113, %cst_43 {dimension_numbers = #tpu.dot_dimension_numbers<[1], [0], [0], [1], [0, 0, 1, 1], [], []>} : vector<16x32xf32>, vector<32x32xf32>, vector<16x32xf32> -> vector<16x32xf32>
    %c2 = arith.constant 2 : index
    %c0_44 = arith.constant 0 : index
    %115 = vector.load %arg4[%c2, %c0_44] : memref<13x128xf32, #tpu.memory_space<vmem>>, vector<1x32xf32>
    %116 = vector.broadcast %115 : vector<1x32xf32> to vector<16x32xf32>
    %117 = arith.addf %114, %116 : vector<16x32xf32>
    %c32_45 = arith.constant 32 : index
    %c32_46 = arith.constant 32 : index
    %118 = vector.load %arg3[%c32_45, %c32_46] : memref<160x128xf32, #tpu.memory_space<vmem>>, vector<32x64xf32>
    %cst_47 = arith.constant dense<0.000000e+00> : vector<32x64xf32>
    %119 = tpu.matmul %1, %118, %cst_47 {dimension_numbers = #tpu.dot_dimension_numbers<[1], [0], [0], [1], [0, 0, 1, 1], [], []>} : vector<32x32xf32>, vector<32x64xf32>, vector<32x64xf32> -> vector<32x64xf32>
    %c3 = arith.constant 3 : index
    %c0_48 = arith.constant 0 : index
    %120 = vector.load %arg4[%c3, %c0_48] : memref<13x128xf32, #tpu.memory_space<vmem>>, vector<1x64xf32>
    %121 = vector.broadcast %120 : vector<1x64xf32> to vector<32x64xf32>
    %122 = arith.addf %119, %121 : vector<32x64xf32>
    %123 = vector.extract_strided_slice %122 {offsets = [0, 0], sizes = [32, 32], strides = [1, 1]} : vector<32x64xf32> to vector<32x32xf32>
    %124 = vector.extract_strided_slice %122 {offsets = [0, 32], sizes = [32, 32], strides = [1, 1]} : vector<32x64xf32> to vector<32x32xf32>
    %c32_49 = arith.constant 32 : index
    %c96_50 = arith.constant 96 : index
    %125 = vector.load %arg3[%c32_49, %c96_50] : memref<160x128xf32, #tpu.memory_space<vmem>>, vector<32x32xf32>
    %c4 = arith.constant 4 : index
    %c0_51 = arith.constant 0 : index
    %126 = vector.load %arg4[%c4, %c0_51] : memref<13x128xf32, #tpu.memory_space<vmem>>, vector<1x32xf32>
    %cst_52 = arith.constant 0.353553385 : f32
    %127 = vector.broadcast %cst_52 : f32 to vector<16x32xf32>
    %128 = arith.mulf %117, %127 : vector<16x32xf32>
    %129 = vector.extract_strided_slice %128 {offsets = [0, 0], sizes = [16, 8], strides = [1, 1]} : vector<16x32xf32> to vector<16x8xf32>
    %130 = vector.extract_strided_slice %123 {offsets = [0, 0], sizes = [32, 8], strides = [1, 1]} : vector<32x32xf32> to vector<32x8xf32>
    %cst_53 = arith.constant dense<0.000000e+00> : vector<16x32xf32>
    %131 = tpu.matmul %129, %130, %cst_53 {dimension_numbers = #tpu.dot_dimension_numbers<[1], [1], [0], [0], [0, 0, 1, 0], [], []>} : vector<16x8xf32>, vector<32x8xf32>, vector<16x32xf32> -> vector<16x32xf32>
    %132 = arith.addf %131, %3 : vector<16x32xf32>
    %cst_54 = arith.constant dense<0xFF800000> : vector<16xf32>
    %133 = vector.multi_reduction <maximumf>, %132, %cst_54 [1] : vector<16x32xf32> to vector<16xf32>
    %134 = vector.shape_cast %133 : vector<16xf32> to vector<16x1xf32>
    %135 = vector.broadcast %134 : vector<16x1xf32> to vector<16x32xf32>
    %136 = arith.subf %132, %135 : vector<16x32xf32>
    %137 = math.exp %136 : vector<16x32xf32>
    %cst_55 = arith.constant dense<0.000000e+00> : vector<16xf32>
    %138 = vector.multi_reduction <add>, %137, %cst_55 [1] : vector<16x32xf32> to vector<16xf32>
    %139 = vector.shape_cast %138 : vector<16xf32> to vector<16x1xf32>
    %cst_56 = arith.constant 1.000000e+00 : f32
    %140 = vector.broadcast %cst_56 : f32 to vector<16x1xf32>
    %141 = arith.divf %140, %139 : vector<16x1xf32>
    %142 = vector.broadcast %141 : vector<16x1xf32> to vector<16x32xf32>
    %143 = arith.mulf %137, %142 : vector<16x32xf32>
    %144 = vector.extract_strided_slice %124 {offsets = [0, 0], sizes = [32, 8], strides = [1, 1]} : vector<32x32xf32> to vector<32x8xf32>
    %cst_57 = arith.constant dense<0.000000e+00> : vector<16x8xf32>
    %145 = tpu.matmul %143, %144, %cst_57 {dimension_numbers = #tpu.dot_dimension_numbers<[1], [0], [0], [1], [0, 0, 1, 1], [], []>} : vector<16x32xf32>, vector<32x8xf32>, vector<16x8xf32> -> vector<16x8xf32>
    %146 = vector.extract_strided_slice %128 {offsets = [0, 8], sizes = [16, 8], strides = [1, 1]} : vector<16x32xf32> to vector<16x8xf32>
    %147 = vector.extract_strided_slice %123 {offsets = [0, 8], sizes = [32, 8], strides = [1, 1]} : vector<32x32xf32> to vector<32x8xf32>
    %cst_58 = arith.constant dense<0.000000e+00> : vector<16x32xf32>
    %148 = tpu.matmul %146, %147, %cst_58 {dimension_numbers = #tpu.dot_dimension_numbers<[1], [1], [0], [0], [0, 0, 1, 0], [], []>} : vector<16x8xf32>, vector<32x8xf32>, vector<16x32xf32> -> vector<16x32xf32>
    %149 = arith.addf %148, %3 : vector<16x32xf32>
    %cst_59 = arith.constant dense<0xFF800000> : vector<16xf32>
    %150 = vector.multi_reduction <maximumf>, %149, %cst_59 [1] : vector<16x32xf32> to vector<16xf32>
    %151 = vector.shape_cast %150 : vector<16xf32> to vector<16x1xf32>
    %152 = vector.broadcast %151 : vector<16x1xf32> to vector<16x32xf32>
    %153 = arith.subf %149, %152 : vector<16x32xf32>
    %154 = math.exp %153 : vector<16x32xf32>
    %cst_60 = arith.constant dense<0.000000e+00> : vector<16xf32>
    %155 = vector.multi_reduction <add>, %154, %cst_60 [1] : vector<16x32xf32> to vector<16xf32>
    %156 = vector.shape_cast %155 : vector<16xf32> to vector<16x1xf32>
    %cst_61 = arith.constant 1.000000e+00 : f32
    %157 = vector.broadcast %cst_61 : f32 to vector<16x1xf32>
    %158 = arith.divf %157, %156 : vector<16x1xf32>
    %159 = vector.broadcast %158 : vector<16x1xf32> to vector<16x32xf32>
    %160 = arith.mulf %154, %159 : vector<16x32xf32>
    %161 = vector.extract_strided_slice %124 {offsets = [0, 8], sizes = [32, 8], strides = [1, 1]} : vector<32x32xf32> to vector<32x8xf32>
    %cst_62 = arith.constant dense<0.000000e+00> : vector<16x8xf32>
    %162 = tpu.matmul %160, %161, %cst_62 {dimension_numbers = #tpu.dot_dimension_numbers<[1], [0], [0], [1], [0, 0, 1, 1], [], []>} : vector<16x32xf32>, vector<32x8xf32>, vector<16x8xf32> -> vector<16x8xf32>
    %163 = vector.extract_strided_slice %128 {offsets = [0, 16], sizes = [16, 8], strides = [1, 1]} : vector<16x32xf32> to vector<16x8xf32>
    %164 = vector.extract_strided_slice %123 {offsets = [0, 16], sizes = [32, 8], strides = [1, 1]} : vector<32x32xf32> to vector<32x8xf32>
    %cst_63 = arith.constant dense<0.000000e+00> : vector<16x32xf32>
    %165 = tpu.matmul %163, %164, %cst_63 {dimension_numbers = #tpu.dot_dimension_numbers<[1], [1], [0], [0], [0, 0, 1, 0], [], []>} : vector<16x8xf32>, vector<32x8xf32>, vector<16x32xf32> -> vector<16x32xf32>
    %166 = arith.addf %165, %3 : vector<16x32xf32>
    %cst_64 = arith.constant dense<0xFF800000> : vector<16xf32>
    %167 = vector.multi_reduction <maximumf>, %166, %cst_64 [1] : vector<16x32xf32> to vector<16xf32>
    %168 = vector.shape_cast %167 : vector<16xf32> to vector<16x1xf32>
    %169 = vector.broadcast %168 : vector<16x1xf32> to vector<16x32xf32>
    %170 = arith.subf %166, %169 : vector<16x32xf32>
    %171 = math.exp %170 : vector<16x32xf32>
    %cst_65 = arith.constant dense<0.000000e+00> : vector<16xf32>
    %172 = vector.multi_reduction <add>, %171, %cst_65 [1] : vector<16x32xf32> to vector<16xf32>
    %173 = vector.shape_cast %172 : vector<16xf32> to vector<16x1xf32>
    %cst_66 = arith.constant 1.000000e+00 : f32
    %174 = vector.broadcast %cst_66 : f32 to vector<16x1xf32>
    %175 = arith.divf %174, %173 : vector<16x1xf32>
    %176 = vector.broadcast %175 : vector<16x1xf32> to vector<16x32xf32>
    %177 = arith.mulf %171, %176 : vector<16x32xf32>
    %178 = vector.extract_strided_slice %124 {offsets = [0, 16], sizes = [32, 8], strides = [1, 1]} : vector<32x32xf32> to vector<32x8xf32>
    %cst_67 = arith.constant dense<0.000000e+00> : vector<16x8xf32>
    %179 = tpu.matmul %177, %178, %cst_67 {dimension_numbers = #tpu.dot_dimension_numbers<[1], [0], [0], [1], [0, 0, 1, 1], [], []>} : vector<16x32xf32>, vector<32x8xf32>, vector<16x8xf32> -> vector<16x8xf32>
    %180 = vector.extract_strided_slice %128 {offsets = [0, 24], sizes = [16, 8], strides = [1, 1]} : vector<16x32xf32> to vector<16x8xf32>
    %181 = vector.extract_strided_slice %123 {offsets = [0, 24], sizes = [32, 8], strides = [1, 1]} : vector<32x32xf32> to vector<32x8xf32>
    %cst_68 = arith.constant dense<0.000000e+00> : vector<16x32xf32>
    %182 = tpu.matmul %180, %181, %cst_68 {dimension_numbers = #tpu.dot_dimension_numbers<[1], [1], [0], [0], [0, 0, 1, 0], [], []>} : vector<16x8xf32>, vector<32x8xf32>, vector<16x32xf32> -> vector<16x32xf32>
    %183 = arith.addf %182, %3 : vector<16x32xf32>
    %cst_69 = arith.constant dense<0xFF800000> : vector<16xf32>
    %184 = vector.multi_reduction <maximumf>, %183, %cst_69 [1] : vector<16x32xf32> to vector<16xf32>
    %185 = vector.shape_cast %184 : vector<16xf32> to vector<16x1xf32>
    %186 = vector.broadcast %185 : vector<16x1xf32> to vector<16x32xf32>
    %187 = arith.subf %183, %186 : vector<16x32xf32>
    %188 = math.exp %187 : vector<16x32xf32>
    %cst_70 = arith.constant dense<0.000000e+00> : vector<16xf32>
    %189 = vector.multi_reduction <add>, %188, %cst_70 [1] : vector<16x32xf32> to vector<16xf32>
    %190 = vector.shape_cast %189 : vector<16xf32> to vector<16x1xf32>
    %cst_71 = arith.constant 1.000000e+00 : f32
    %191 = vector.broadcast %cst_71 : f32 to vector<16x1xf32>
    %192 = arith.divf %191, %190 : vector<16x1xf32>
    %193 = vector.broadcast %192 : vector<16x1xf32> to vector<16x32xf32>
    %194 = arith.mulf %188, %193 : vector<16x32xf32>
    %195 = vector.extract_strided_slice %124 {offsets = [0, 24], sizes = [32, 8], strides = [1, 1]} : vector<32x32xf32> to vector<32x8xf32>
    %cst_72 = arith.constant dense<0.000000e+00> : vector<16x8xf32>
    %196 = tpu.matmul %194, %195, %cst_72 {dimension_numbers = #tpu.dot_dimension_numbers<[1], [0], [0], [1], [0, 0, 1, 1], [], []>} : vector<16x32xf32>, vector<32x8xf32>, vector<16x8xf32> -> vector<16x8xf32>
    %197 = tpu.concatenate %145, %162, %179, %196 in 1 : vector<16x8xf32>, vector<16x8xf32>, vector<16x8xf32>, vector<16x8xf32> -> vector<16x32xf32>
    %cst_73 = arith.constant dense<0.000000e+00> : vector<16x32xf32>
    %198 = tpu.matmul %197, %125, %cst_73 {dimension_numbers = #tpu.dot_dimension_numbers<[1], [0], [0], [1], [0, 0, 1, 1], [], []>} : vector<16x32xf32>, vector<32x32xf32>, vector<16x32xf32> -> vector<16x32xf32>
    %199 = vector.broadcast %126 : vector<1x32xf32> to vector<16x32xf32>
    %200 = arith.addf %198, %199 : vector<16x32xf32>
    %201 = arith.addf %112, %200 : vector<16x32xf32>
    %c9 = arith.constant 9 : index
    %c0_74 = arith.constant 0 : index
    %202 = vector.load %arg4[%c9, %c0_74] : memref<13x128xf32, #tpu.memory_space<vmem>>, vector<1x32xf32>
    %c10 = arith.constant 10 : index
    %c0_75 = arith.constant 0 : index
    %203 = vector.load %arg4[%c10, %c0_75] : memref<13x128xf32, #tpu.memory_space<vmem>>, vector<1x32xf32>
    %cst_76 = arith.constant dense<0.000000e+00> : vector<16xf32>
    %204 = vector.multi_reduction <add>, %201, %cst_76 [1] : vector<16x32xf32> to vector<16xf32>
    %205 = vector.shape_cast %204 : vector<16xf32> to vector<16x1xf32>
    %cst_77 = arith.constant 3.200000e+01 : f32
    %206 = vector.broadcast %cst_77 : f32 to vector<16x1xf32>
    %207 = arith.divf %205, %206 : vector<16x1xf32>
    %208 = vector.broadcast %207 : vector<16x1xf32> to vector<16x32xf32>
    %209 = arith.subf %201, %208 : vector<16x32xf32>
    %210 = arith.mulf %209, %209 : vector<16x32xf32>
    %cst_78 = arith.constant dense<0.000000e+00> : vector<16xf32>
    %211 = vector.multi_reduction <add>, %210, %cst_78 [1] : vector<16x32xf32> to vector<16xf32>
    %212 = vector.shape_cast %211 : vector<16xf32> to vector<16x1xf32>
    %cst_79 = arith.constant 0.0322580636 : f32
    %213 = vector.broadcast %cst_79 : f32 to vector<16x1xf32>
    %214 = arith.mulf %212, %213 : vector<16x1xf32>
    %215 = math.sqrt %214 : vector<16x1xf32>
    %cst_80 = arith.constant 9.99999997E-7 : f32
    %216 = vector.broadcast %cst_80 : f32 to vector<16x1xf32>
    %217 = arith.addf %215, %216 : vector<16x1xf32>
    %cst_81 = arith.constant 1.000000e+00 : f32
    %218 = vector.broadcast %cst_81 : f32 to vector<16x1xf32>
    %219 = arith.divf %218, %217 : vector<16x1xf32>
    %220 = vector.broadcast %202 : vector<1x32xf32> to vector<16x32xf32>
    %221 = arith.mulf %220, %209 : vector<16x32xf32>
    %222 = vector.broadcast %219 : vector<16x1xf32> to vector<16x32xf32>
    %223 = arith.mulf %221, %222 : vector<16x32xf32>
    %224 = vector.broadcast %203 : vector<1x32xf32> to vector<16x32xf32>
    %225 = arith.addf %223, %224 : vector<16x32xf32>
    %c64 = arith.constant 64 : index
    %c0_82 = arith.constant 0 : index
    %226 = vector.load %arg3[%c64, %c0_82] : memref<160x128xf32, #tpu.memory_space<vmem>>, vector<32x64xf32>
    %cst_83 = arith.constant dense<0.000000e+00> : vector<16x64xf32>
    %227 = tpu.matmul %225, %226, %cst_83 {dimension_numbers = #tpu.dot_dimension_numbers<[1], [0], [0], [1], [0, 0, 1, 1], [], []>} : vector<16x32xf32>, vector<32x64xf32>, vector<16x64xf32> -> vector<16x64xf32>
    %c5 = arith.constant 5 : index
    %c0_84 = arith.constant 0 : index
    %228 = vector.load %arg4[%c5, %c0_84] : memref<13x128xf32, #tpu.memory_space<vmem>>, vector<1x64xf32>
    %229 = vector.broadcast %228 : vector<1x64xf32> to vector<16x64xf32>
    %230 = arith.addf %227, %229 : vector<16x64xf32>
    %cst_85 = arith.constant 0.000000e+00 : f32
    %231 = vector.broadcast %cst_85 : f32 to vector<16x64xf32>
    %232 = arith.maximumf %230, %231 : vector<16x64xf32>
    %c96_86 = arith.constant 96 : index
    %c0_87 = arith.constant 0 : index
    %233 = vector.load %arg3[%c96_86, %c0_87] : memref<160x128xf32, #tpu.memory_space<vmem>>, vector<64x32xf32>
    %cst_88 = arith.constant dense<0.000000e+00> : vector<16x32xf32>
    %234 = tpu.matmul %232, %233, %cst_88 {dimension_numbers = #tpu.dot_dimension_numbers<[1], [0], [0], [1], [0, 0, 1, 1], [], []>} : vector<16x64xf32>, vector<64x32xf32>, vector<16x32xf32> -> vector<16x32xf32>
    %c6 = arith.constant 6 : index
    %c0_89 = arith.constant 0 : index
    %235 = vector.load %arg4[%c6, %c0_89] : memref<13x128xf32, #tpu.memory_space<vmem>>, vector<1x32xf32>
    %236 = vector.broadcast %235 : vector<1x32xf32> to vector<16x32xf32>
    %237 = arith.addf %234, %236 : vector<16x32xf32>
    %238 = arith.addf %225, %237 : vector<16x32xf32>
    %c11 = arith.constant 11 : index
    %c0_90 = arith.constant 0 : index
    %239 = vector.load %arg4[%c11, %c0_90] : memref<13x128xf32, #tpu.memory_space<vmem>>, vector<1x32xf32>
    %c12 = arith.constant 12 : index
    %c0_91 = arith.constant 0 : index
    %240 = vector.load %arg4[%c12, %c0_91] : memref<13x128xf32, #tpu.memory_space<vmem>>, vector<1x32xf32>
    %cst_92 = arith.constant dense<0.000000e+00> : vector<16xf32>
    %241 = vector.multi_reduction <add>, %238, %cst_92 [1] : vector<16x32xf32> to vector<16xf32>
    %242 = vector.shape_cast %241 : vector<16xf32> to vector<16x1xf32>
    %cst_93 = arith.constant 3.200000e+01 : f32
    %243 = vector.broadcast %cst_93 : f32 to vector<16x1xf32>
    %244 = arith.divf %242, %243 : vector<16x1xf32>
    %245 = vector.broadcast %244 : vector<16x1xf32> to vector<16x32xf32>
    %246 = arith.subf %238, %245 : vector<16x32xf32>
    %247 = arith.mulf %246, %246 : vector<16x32xf32>
    %cst_94 = arith.constant dense<0.000000e+00> : vector<16xf32>
    %248 = vector.multi_reduction <add>, %247, %cst_94 [1] : vector<16x32xf32> to vector<16xf32>
    %249 = vector.shape_cast %248 : vector<16xf32> to vector<16x1xf32>
    %cst_95 = arith.constant 0.0322580636 : f32
    %250 = vector.broadcast %cst_95 : f32 to vector<16x1xf32>
    %251 = arith.mulf %249, %250 : vector<16x1xf32>
    %252 = math.sqrt %251 : vector<16x1xf32>
    %cst_96 = arith.constant 9.99999997E-7 : f32
    %253 = vector.broadcast %cst_96 : f32 to vector<16x1xf32>
    %254 = arith.addf %252, %253 : vector<16x1xf32>
    %cst_97 = arith.constant 1.000000e+00 : f32
    %255 = vector.broadcast %cst_97 : f32 to vector<16x1xf32>
    %256 = arith.divf %255, %254 : vector<16x1xf32>
    %257 = vector.broadcast %239 : vector<1x32xf32> to vector<16x32xf32>
    %258 = arith.mulf %257, %246 : vector<16x32xf32>
    %259 = vector.broadcast %256 : vector<16x1xf32> to vector<16x32xf32>
    %260 = arith.mulf %258, %259 : vector<16x32xf32>
    %261 = vector.broadcast %240 : vector<1x32xf32> to vector<16x32xf32>
    %262 = arith.addf %260, %261 : vector<16x32xf32>
    %c0_98 = arith.constant 0 : index
    %c0_99 = arith.constant 0 : index
    %263 = vector.load %arg5[%c0_98, %c0_99] : memref<16x32xf32, #tpu.memory_space<vmem>>, vector<16x32xf32>
    tpu.vector_store %arg5[%c0_98, %c0_99], %262 {strides = array<i32>} : memref<16x32xf32, #tpu.memory_space<vmem>>, vector<16x32xf32>,
    return
  }
}

</mosaic_0001>

<llo_original>
// kernel: tpu_custom_call.1
$region0: #{tpu_custom_call.1}
  #allocation0 [shape = 'u32[]', space=smem, size = 0x4, offset = 0x4, fixed_abs, tag = 'smem constant byte address 0x4 - core index']
  #allocation1 [shape = 'u32[72,128]{1,0:T(1,128)}', space=vmem, size = 0x9000, scoped, tag = 'internal scratch']
  %s0 = inlined_call_operand.hbm [shape: f32[16,32], index: 0, kind: input, shape index: {}]
  %s1 = inlined_call_operand.hbm [shape: f32[32,32], index: 1, kind: input, shape index: {}]
  %s2 = inlined_call_operand.hbm [shape: f32[32,32], index: 2, kind: input, shape index: {}]
  %s3 = inlined_call_operand.hbm [shape: f32[160,128], index: 3, kind: input, shape index: {}]
  %s4 = inlined_call_operand.hbm [shape: f32[13,128], index: 4, kind: input, shape index: {}]
  %s5 = inlined_call_operand.hbm [shape: f32[16,32], index: 5, kind: output, shape index: {}]
  %s6 = sld [smem:[#allocation0]]
  $region50: #{tpu_custom_call.1} parent=0
    _
  %s8 = ssub.s32 1, %s6
  %s9 = scalar_select 0, %s8, %s6
  $region1: #{tpu_custom_call.1} parent=0
    #allocation2 [shape = 'u8[8192]{0}', space=vmem, size = 0x2000, scoped, tag = 'input window, operand 0, single buffered']
    #allocation3 [shape = 's32[1]{0}', space=sflag, size = 0x4, scoped, tag = 'scoped memory for tpu_custom_call.1']
    #allocation4 [shape = 's32[1]{0}', space=sflag, size = 0x4, scoped, tag = 'scoped memory for tpu_custom_call.1']
    #allocation5 [shape = 'u8[16384]{0}', space=vmem, size = 0x4000, scoped, tag = 'input window, operand 1, single buffered']
    #allocation6 [shape = 's32[1]{0}', space=sflag, size = 0x4, scoped, tag = 'scoped memory for tpu_custom_call.1']
    #allocation7 [shape = 'u8[16384]{0}', space=vmem, size = 0x4000, scoped, tag = 'input window, operand 2, single buffered']
    #allocation8 [shape = 'u8[81920]{0}', space=vmem, size = 0x14000, scoped, tag = 'input window, operand 3, single buffered']
    #allocation9 [shape = 's32[1]{0}', space=sflag, size = 0x4, scoped, tag = 'scoped memory for tpu_custom_call.1']
    #allocation10 [shape = 'u8[8192]{0}', space=vmem, size = 0x2000, scoped, tag = 'input window, operand 4, single buffered']
    #allocation11 [shape = 'u8[8192]{0}', space=vmem, size = 0x2000, scoped, tag = 'output window, operand 0, single buffered']
    %10 = vsyncpa [#allocation3], 0
    %11 = vsyncpa [#allocation6], 0
    %12 = vsyncpa [#allocation9], 0
    %13 = vsyncpa [#allocation4], 0
    // Predicated region
    $region2: #{tpu_custom_call.1} parent=1 // pred_check
      _
    $region3: #{tpu_custom_call.1} parent=1 // pred_check_branch
      %15 = sbr.rel (0) target = $region5
    $region4: #{tpu_custom_call.1} parent=1 // pred_region
      %17 = vsyncadd [#allocation3], 0
      %s18 = sshll.u32 %s0, 4
      %s19 = int_to_ptr.hbm [resolvable:$true] %s18
      %s20 = sshll.u32 [#allocation2], 4
      %s21 = int_to_ptr.vmem [resolvable:$true] %s20
      %26 = dma.hbm_to_vmem [thread:$0]  %s19, 256, %s21, [#allocation3], 128, 128, 8
    $region5: #{tpu_custom_call.1} parent=1 // pred_fallthru
      _
    // Predicated region
    $region6: #{tpu_custom_call.1} parent=1 // pred_check
      _
    $region7: #{tpu_custom_call.1} parent=1 // pred_check_branch
      %28 = sbr.rel (0) target = $region9
    $region8: #{tpu_custom_call.1} parent=1 // pred_region
      %30 = vsyncadd [#allocation6], 0
      %s31 = sshll.u32 %s1, 4
      %s32 = int_to_ptr.hbm [resolvable:$true] %s31
      %s33 = sshll.u32 [#allocation5], 4
      %s34 = int_to_ptr.vmem [resolvable:$true] %s33
      %39 = dma.hbm_to_vmem [thread:$0]  %s32, 512, %s34, [#allocation6], 128, 128, 8
    $region9: #{tpu_custom_call.1} parent=1 // pred_fallthru
      _
    // Predicated region
    $region10: #{tpu_custom_call.1} parent=1 // pred_check
      _
    $region11: #{tpu_custom_call.1} parent=1 // pred_check_branch
      %41 = sbr.rel (0) target = $region13
    $region12: #{tpu_custom_call.1} parent=1 // pred_region
      %43 = vsyncadd [#allocation6], 0
      %s44 = sshll.u32 %s2, 4
      %s45 = int_to_ptr.hbm [resolvable:$true] %s44
      %s46 = sshll.u32 [#allocation7], 4
      %s47 = int_to_ptr.vmem [resolvable:$true] %s46
      %52 = dma.hbm_to_vmem [thread:$0]  %s45, 512, %s47, [#allocation6], 128, 128, 8
    $region13: #{tpu_custom_call.1} parent=1 // pred_fallthru
      _
    // Predicated region
    $region14: #{tpu_custom_call.1} parent=1 // pred_check
      _
    $region15: #{tpu_custom_call.1} parent=1 // pred_check_branch
      %54 = sbr.rel (0) target = $region17
    $region16: #{tpu_custom_call.1} parent=1 // pred_region
      %56 = vsyncadd [#allocation9], 0
      %s57 = sshll.u32 %s3, 4
      %s58 = int_to_ptr.hbm [resolvable:$true] %s57
      %s59 = sshll.u32 [#allocation8], 4
      %s60 = int_to_ptr.vmem [resolvable:$true] %s59
      %65 = dma.hbm_to_vmem [thread:$0]  %s58, 2560, %s60, [#allocation9], 128, 128, 8
    $region17: #{tpu_custom_call.1} parent=1 // pred_fallthru
      _
    // Predicated region
    $region18: #{tpu_custom_call.1} parent=1 // pred_check
      _
    $region19: #{tpu_custom_call.1} parent=1 // pred_check_branch
      %67 = sbr.rel (0) target = $region21
    $region20: #{tpu_custom_call.1} parent=1 // pred_region
      %69 = vsyncadd [#allocation9], 0
      %s70 = sshll.u32 %s4, 4
      %s71 = int_to_ptr.hbm [resolvable:$true] %s70
      %s72 = sshll.u32 [#allocation10], 4
      %s73 = int_to_ptr.vmem [resolvable:$true] %s72
      %78 = dma.hbm_to_vmem [thread:$0]  %s71, 256, %s73, [#allocation9], 128, 128, 8
    $region21: #{tpu_custom_call.1} parent=1 // pred_fallthru
      _
    // Predicated region
    $region22: #{tpu_custom_call.1} parent=1 // pred_check
      _
    $region23: #{tpu_custom_call.1} parent=1 // pred_check_branch
      %80 = sbr.rel (0) target = $region25
    $region24: #{tpu_custom_call.1} parent=1 // pred_region
      %82 = dma.done [#allocation3], 256
    $region25: #{tpu_custom_call.1} parent=1 // pred_fallthru
      _
    // Predicated region
    $region26: #{tpu_custom_call.1} parent=1 // pred_check
      _
    $region27: #{tpu_custom_call.1} parent=1 // pred_check_branch
      %84 = sbr.rel (0) target = $region29
    $region28: #{tpu_custom_call.1} parent=1 // pred_region
      %86 = dma.done [#allocation6], 512
    $region29: #{tpu_custom_call.1} parent=1 // pred_fallthru
      _
    // Predicated region
    $region30: #{tpu_custom_call.1} parent=1 // pred_check
      _
    $region31: #{tpu_custom_call.1} parent=1 // pred_check_branch
      %88 = sbr.rel (0) target = $region33
    $region32: #{tpu_custom_call.1} parent=1 // pred_region
      %90 = dma.done [#allocation6], 512
    $region33: #{tpu_custom_call.1} parent=1 // pred_fallthru
      _
    // Predicated region
    $region34: #{tpu_custom_call.1} parent=1 // pred_check
      _
    $region35: #{tpu_custom_call.1} parent=1 // pred_check_branch
      %92 = sbr.rel (0) target = $region37
    $region36: #{tpu_custom_call.1} parent=1 // pred_region
      %94 = dma.done [#allocation9], 2560
    $region37: #{tpu_custom_call.1} parent=1 // pred_fallthru
      _
    // Predicated region
    $region38: #{tpu_custom_call.1} parent=1 // pred_check
      _
    $region39: #{tpu_custom_call.1} parent=1 // pred_check_branch
      %96 = sbr.rel (0) target = $region41
    $region40: #{tpu_custom_call.1} parent=1 // pred_region
      %98 = dma.done [#allocation9], 256
    $region41: #{tpu_custom_call.1} parent=1 // pred_fallthru
      _
    %v99 = vld [vmem:[#allocation2] sm:$0xff]
    %v100 = vld [vmem:[#allocation2 + $0x8] sm:$0xff]
    %v101 = vld [vmem:[#allocation5] sm:$0xff]
    %v102 = vld [vmem:[#allocation5 + $0x8] sm:$0xff]
    %v103 = vld [vmem:[#allocation5 + $0x10] sm:$0xff]
    %v104 = vld [vmem:[#allocation5 + $0x18] sm:$0xff]
    %v105 = vld [vmem:[#allocation7] sm:$0xff]
    %v106 = vld [vmem:[#allocation7 + $0x8] sm:$0xff]
    %v107 = vld [vmem:[#allocation7 + $0x10] sm:$0xff]
    %v108 = vld [vmem:[#allocation7 + $0x18] sm:$0xff]
    %v109 = vld [vmem:[#allocation8] sm:$0xff]
    %v110 = vld [vmem:[#allocation8 + $0x8] sm:$0xff]
    %v111 = vld [vmem:[#allocation8 + $0x10] sm:$0xff]
    %v112 = vld [vmem:[#allocation8 + $0x18] sm:$0xff]
    %v113 = vld [vmem:[#allocation10] sm:$0x1]
    %v114 = vperm.slane %v113, 0
    %vm115 = vcmask 261120
    %v117 = vsel %vm115, %v99, 0
    %v120 = vsel %vm115, %v100, 0
    %122 = vmatpush.msra.mxu0 0.0
    %123 = vmatpush.msra.mxu0 0.0
    %124 = vmatpush.msra.mxu0 0.0
    %125 = vmatpush.msra.mxu0 0.0
    %126 = vmatpush.msra.mxu0 0.0
    %127 = vmatpush.msra.mxu0 0.0
    %128 = vmatpush.msra.mxu0 0.0
    %129 = vmatpush.msra.mxu0 0.0
    %130 = vmatpush.msra.mxu0 0.0
    %131 = vmatpush.msra.mxu0 0.0
    %132 = vmatpush.msra.mxu0 0.0
    %133 = vmatpush.msra.mxu0 0.0
    %134 = vmatpush.msra.mxu0 %v112
    %135 = vmatpush.msra.mxu0 %v111
    %136 = vmatpush.msra.mxu0 %v110
    %137 = vmatpush.msra.mxu0 %v109
    %138 = vmatmul.f32.gmra.mxu0 %v117
    %v139 = vpop.f32.mrf.mxu0
    %v140 = vadd.f32 %v114, %v139
    %141 = vmatmul.f32.gmra.mxu0 %v120
    %v142 = vpop.f32.mrf.mxu0
    %v143 = vadd.f32 %v114, %v142
    %144 = vdwg.mxu0
    %v145 = vld [vmem:[#allocation10 + $0x1] sm:$0x1]
    %v146 = vmul.f32 %v140, 0.35355338
    %v147 = vmul.f32 %v143, 0.35355338
    %150 = vrot.lane.b32.xlu0 %v140, 96
    %v151 = vpop.permute.xlu0 %150
    %152 = vrot.lane.b32.xlu0 %v143, 96
    %v153 = vpop.permute.xlu0 %152
    %vm154 = vcmask 64512
    %v156 = vsel %vm154, %v146, 0
    %v159 = vsel %vm154, %v147, 0
    %v161 = vsel %vm154, %v151, 0
    %v163 = vsel %vm154, %v153, 0
    %165 = vmatpush.xpose.msra.mxu0 0.0
    %166 = vmatpush.xpose.msra.mxu0 0.0
    %167 = vmatpush.xpose.msra.mxu0 0.0
    %168 = vmatpush.xpose.msra.mxu0 0.0
    %169 = vmatpush.xpose.msra.mxu0 0.0
    %170 = vmatpush.xpose.msra.mxu0 0.0
    %171 = vmatpush.xpose.msra.mxu0 0.0
    %172 = vmatpush.xpose.msra.mxu0 0.0
    %173 = vmatpush.xpose.msra.mxu0 0.0
    %174 = vmatpush.xpose.msra.mxu0 0.0
    %175 = vmatpush.xpose.msra.mxu0 0.0
    %176 = vmatpush.xpose.msra.mxu0 0.0
    %177 = vmatpush.xpose.msra.mxu0 0.0
    %178 = vmatpush.xpose.msra.mxu0 0.0
    %179 = vmatpush.xpose.msra.mxu0 %v163
    %180 = vmatpush.xpose.msra.mxu0 %v161
    %181 = vmatmul.f32.gmra.mxu0 %v156
    %v182 = vpop.f32.mrf.mxu0
    %v183 = vadd.f32 %v105, %v182
    %184 = vmatmul.f32.gmra.mxu0 %v159
    %v185 = vpop.f32.mrf.mxu0
    %v186 = vadd.f32 %v106, %v185
    %187 = vdwg.mxu0
    %vm188 = vcmask 130048
    %v189 = vsel %vm188, %v183, -inf
    %190 = vmax.xlane.f32.xlu0 %v189
    %v191 = vpop.xlane.xlu0 %190
    %v192 = vsel %vm188, %v186, -inf
    %193 = vmax.xlane.f32.xlu0 %v192
    %v194 = vpop.xlane.xlu0 %193
    %v195 = vsub.f32 %v183, %v191
    %v196 = vsub.f32 %v186, %v194
    %v197 = vmul.f32 %v195, 1.442695
    %v198 = vpow.pop %v197
    %v199 = vmul.f32 %v196, 1.442695
    %v200 = vpow.pop %v199
    %v201 = vsel %vm188, %v198, 0.0
    %202 = vadd.xlane.f32.xlu0 %v201
    %v203 = vpop.xlane.xlu0 %202
    %v204 = vsel %vm188, %v200, 0.0
    %205 = vadd.xlane.f32.xlu0 %v204
    %v206 = vpop.xlane.xlu0 %205
    %v207 = vrcp.pop %v203
    %v208 = vmul.f32 %v203, %v207
    %v209 = vsub.f32 1.0, %v208
    %v210 = vmul.f32 %v207, %v209
    %v211 = vadd.f32 %v207, %v210
    %vm212 = vweird.f32 %v203
    %vm213 = vweird.f32 %v207
    %vm214 = vmor %vm212, %vm213
    %v215 = vsel %vm214, %v207, %v211
    %v216 = vand.u32 2147483647, %v203
    %vm217 = vcmp.eq.f32.partialorder %v216, 8.507059e+37
    %v218 = vand.u32 %v203, 2147483648
    %v219 = vor.u32 1.1754944e-38, %v218
    %v220 = vsel %vm217, %v219, %v215
    %v221 = vmul.f32 1.0, %v220
    %v222 = vrcp.pop %v206
    %v223 = vmul.f32 %v206, %v222
    %v224 = vsub.f32 1.0, %v223
    %v225 = vmul.f32 %v222, %v224
    %v226 = vadd.f32 %v222, %v225
    %vm227 = vweird.f32 %v206
    %vm228 = vweird.f32 %v222
    %vm229 = vmor %vm227, %vm228
    %v230 = vsel %vm229, %v222, %v226
    %v231 = vand.u32 2147483647, %v206
    %vm232 = vcmp.eq.f32.partialorder %v231, 8.507059e+37
    %v233 = vand.u32 %v206, 2147483648
    %v234 = vor.u32 1.1754944e-38, %v233
    %v235 = vsel %vm232, %v234, %v230
    %v236 = vmul.f32 1.0, %v235
    %v237 = vmul.f32 %v198, %v221
    %v238 = vmul.f32 %v200, %v236
    %239 = vrot.lane.b32.xlu0 %v140, 64
    %v240 = vpop.permute.xlu0 %239
    %241 = vrot.lane.b32.xlu0 %v143, 64
    %v242 = vpop.permute.xlu0 %241
    %v246 = vsel %vm188, %v237, 0
    %v249 = vsel %vm188, %v238, 0
    %251 = vmatpush.msra.mxu0 0.0
    %252 = vmatpush.msra.mxu0 0.0
    %253 = vmatpush.msra.mxu0 0.0
    %254 = vmatpush.msra.mxu0 0.0
    %255 = vmatpush.msra.mxu0 0.0
    %256 = vmatpush.msra.mxu0 0.0
    %257 = vmatpush.msra.mxu0 0.0
    %258 = vmatpush.msra.mxu0 0.0
    %259 = vmatpush.msra.mxu0 0.0
    %260 = vmatpush.msra.mxu0 0.0
    %261 = vmatpush.msra.mxu0 0.0
    %262 = vmatpush.msra.mxu0 0.0
    %263 = vmatpush.msra.mxu0 0.0
    %264 = vmatpush.msra.mxu0 0.0
    %265 = vmatpush.msra.mxu0 %v242
    %266 = vmatpush.msra.mxu0 %v240
    %267 = vmatmul.f32.gmra.mxu0 %v246
    %v268 = vpop.f32.mrf.mxu0
    %v269 = vadd.f32 0.0, %v268
    %270 = vmatmul.f32.gmra.mxu0 %v249
    %v271 = vpop.f32.mrf.mxu0
    %v272 = vadd.f32 0.0, %v271
    %273 = vdwg.mxu0
    %274 = vrot.lane.b32.xlu0 %v146, 120
    %v275 = vpop.permute.xlu0 %274
    %276 = vrot.lane.b32.xlu0 %v147, 120
    %v277 = vpop.permute.xlu0 %276
    %278 = vrot.lane.b32.xlu0 %v140, 88
    %v279 = vpop.permute.xlu0 %278
    %280 = vrot.lane.b32.xlu0 %v143, 88
    %v281 = vpop.permute.xlu0 %280
    %v282 = vsel %vm154, %v275, 0
    %v284 = vsel %vm154, %v277, 0
    %v286 = vsel %vm154, %v279, 0
    %v288 = vsel %vm154, %v281, 0
    %290 = vmatpush.xpose.msra.mxu0 0.0
    %291 = vmatpush.xpose.msra.mxu0 0.0
    %292 = vmatpush.xpose.msra.mxu0 0.0
    %293 = vmatpush.xpose.msra.mxu0 0.0
    %294 = vmatpush.xpose.msra.mxu0 0.0
    %295 = vmatpush.xpose.msra.mxu0 0.0
    %296 = vmatpush.xpose.msra.mxu0 0.0
    %297 = vmatpush.xpose.msra.mxu0 0.0
    %298 = vmatpush.xpose.msra.mxu0 0.0
    %299 = vmatpush.xpose.msra.mxu0 0.0
    %300 = vmatpush.xpose.msra.mxu0 0.0
    %301 = vmatpush.xpose.msra.mxu0 0.0
    %302 = vmatpush.xpose.msra.mxu0 0.0
    %303 = vmatpush.xpose.msra.mxu0 0.0
    %304 = vmatpush.xpose.msra.mxu0 %v288
    %305 = vmatpush.xpose.msra.mxu0 %v286
    %306 = vmatmul.f32.gmra.mxu0 %v282
    %v307 = vpop.f32.mrf.mxu0
    %v308 = vadd.f32 %v105, %v307
    %309 = vmatmul.f32.gmra.mxu0 %v284
    %v310 = vpop.f32.mrf.mxu0
    %v311 = vadd.f32 %v106, %v310
    %312 = vdwg.mxu0
    %v313 = vsel %vm188, %v308, -inf
    %314 = vmax.xlane.f32.xlu0 %v313
    %v315 = vpop.xlane.xlu0 %314
    %v316 = vsel %vm188, %v311, -inf
    %317 = vmax.xlane.f32.xlu0 %v316
    %v318 = vpop.xlane.xlu0 %317
    %v319 = vsub.f32 %v308, %v315
    %v320 = vsub.f32 %v311, %v318
    %v321 = vmul.f32 %v319, 1.442695
    %v322 = vpow.pop %v321
    %v323 = vmul.f32 %v320, 1.442695
    %v324 = vpow.pop %v323
    %v325 = vsel %vm188, %v322, 0.0
    %326 = vadd.xlane.f32.xlu0 %v325
    %v327 = vpop.xlane.xlu0 %326
    %v328 = vsel %vm188, %v324, 0.0
    %329 = vadd.xlane.f32.xlu0 %v328
    %v330 = vpop.xlane.xlu0 %329
    %v331 = vrcp.pop %v327
    %v332 = vmul.f32 %v327, %v331
    %v333 = vsub.f32 1.0, %v332
    %v334 = vmul.f32 %v331, %v333
    %v335 = vadd.f32 %v331, %v334
    %vm336 = vweird.f32 %v327
    %vm337 = vweird.f32 %v331
    %vm338 = vmor %vm336, %vm337
    %v339 = vsel %vm338, %v331, %v335
    %v340 = vand.u32 2147483647, %v327
    %vm341 = vcmp.eq.f32.partialorder %v340, 8.507059e+37
    %v342 = vand.u32 %v327, 2147483648
    %v343 = vor.u32 1.1754944e-38, %v342
    %v344 = vsel %vm341, %v343, %v339
    %v345 = vmul.f32 1.0, %v344
    %v346 = vrcp.pop %v330
    %v347 = vmul.f32 %v330, %v346
    %v348 = vsub.f32 1.0, %v347
    %v349 = vmul.f32 %v346, %v348
    %v350 = vadd.f32 %v346, %v349
    %vm351 = vweird.f32 %v330
    %vm352 = vweird.f32 %v346
    %vm353 = vmor %vm351, %vm352
    %v354 = vsel %vm353, %v346, %v350
    %v355 = vand.u32 2147483647, %v330
    %vm356 = vcmp.eq.f32.partialorder %v355, 8.507059e+37
    %v357 = vand.u32 %v330, 2147483648
    %v358 = vor.u32 1.1754944e-38, %v357
    %v359 = vsel %vm356, %v358, %v354
    %v360 = vmul.f32 1.0, %v359
    %v361 = vmul.f32 %v322, %v345
    %v362 = vmul.f32 %v324, %v360
    %363 = vrot.lane.b32.xlu0 %v140, 56
    %v364 = vpop.permute.xlu0 %363
    %365 = vrot.lane.b32.xlu0 %v143, 56
    %v366 = vpop.permute.xlu0 %365
    %v370 = vsel %vm188, %v361, 0
    %v373 = vsel %vm188, %v362, 0
    %375 = vmatpush.msra.mxu0 0.0
    %376 = vmatpush.msra.mxu0 0.0
    %377 = vmatpush.msra.mxu0 0.0
    %378 = vmatpush.msra.mxu0 0.0
    %379 = vmatpush.msra.mxu0 0.0
    %380 = vmatpush.msra.mxu0 0.0
    %381 = vmatpush.msra.mxu0 0.0
    %382 = vmatpush.msra.mxu0 0.0
    %383 = vmatpush.msra.mxu0 0.0
    %384 = vmatpush.msra.mxu0 0.0
    %385 = vmatpush.msra.mxu0 0.0
    %386 = vmatpush.msra.mxu0 0.0
    %387 = vmatpush.msra.mxu0 0.0
    %388 = vmatpush.msra.mxu0 0.0
    %389 = vmatpush.msra.mxu0 %v366
    %390 = vmatpush.msra.mxu0 %v364
    %391 = vmatmul.f32.gmra.mxu0 %v370
    %v392 = vpop.f32.mrf.mxu0
    %v393 = vadd.f32 0.0, %v392
    %394 = vmatmul.f32.gmra.mxu0 %v373
    %v395 = vpop.f32.mrf.mxu0
    %v396 = vadd.f32 0.0, %v395
    %397 = vdwg.mxu0
    %398 = vrot.lane.b32.xlu0 %v146, 112
    %v399 = vpop.permute.xlu0 %398
    %400 = vrot.lane.b32.xlu0 %v147, 112
    %v401 = vpop.permute.xlu0 %400
    %402 = vrot.lane.b32.xlu0 %v140, 80
    %v403 = vpop.permute.xlu0 %402
    %404 = vrot.lane.b32.xlu0 %v143, 80
    %v405 = vpop.permute.xlu0 %404
    %v406 = vsel %vm154, %v399, 0
    %v408 = vsel %vm154, %v401, 0
    %v410 = vsel %vm154, %v403, 0
    %v412 = vsel %vm154, %v405, 0
    %414 = vmatpush.xpose.msra.mxu0 0.0
    %415 = vmatpush.xpose.msra.mxu0 0.0
    %416 = vmatpush.xpose.msra.mxu0 0.0
    %417 = vmatpush.xpose.msra.mxu0 0.0
    %418 = vmatpush.xpose.msra.mxu0 0.0
    %419 = vmatpush.xpose.msra.mxu0 0.0
    %420 = vmatpush.xpose.msra.mxu0 0.0
    %421 = vmatpush.xpose.msra.mxu0 0.0
    %422 = vmatpush.xpose.msra.mxu0 0.0
    %423 = vmatpush.xpose.msra.mxu0 0.0
    %424 = vmatpush.xpose.msra.mxu0 0.0
    %425 = vmatpush.xpose.msra.mxu0 0.0
    %426 = vmatpush.xpose.msra.mxu0 0.0
    %427 = vmatpush.xpose.msra.mxu0 0.0
    %428 = vmatpush.xpose.msra.mxu0 %v412
    %429 = vmatpush.xpose.msra.mxu0 %v410
    %430 = vmatmul.f32.gmra.mxu0 %v406
    %v431 = vpop.f32.mrf.mxu0
    %v432 = vadd.f32 %v105, %v431
    %433 = vmatmul.f32.gmra.mxu0 %v408
    %v434 = vpop.f32.mrf.mxu0
    %v435 = vadd.f32 %v106, %v434
    %436 = vdwg.mxu0
    %v437 = vsel %vm188, %v432, -inf
    %438 = vmax.xlane.f32.xlu0 %v437
    %v439 = vpop.xlane.xlu0 %438
    %v440 = vsel %vm188, %v435, -inf
    %441 = vmax.xlane.f32.xlu0 %v440
    %v442 = vpop.xlane.xlu0 %441
    %v443 = vsub.f32 %v432, %v439
    %v444 = vsub.f32 %v435, %v442
    %v445 = vmul.f32 %v443, 1.442695
    %v446 = vpow.pop %v445
    %v447 = vmul.f32 %v444, 1.442695
    %v448 = vpow.pop %v447
    %v449 = vsel %vm188, %v446, 0.0
    %450 = vadd.xlane.f32.xlu0 %v449
    %v451 = vpop.xlane.xlu0 %450
    %v452 = vsel %vm188, %v448, 0.0
    %453 = vadd.xlane.f32.xlu0 %v452
    %v454 = vpop.xlane.xlu0 %453
    %v455 = vrcp.pop %v451
    %v456 = vmul.f32 %v451, %v455
    %v457 = vsub.f32 1.0, %v456
    %v458 = vmul.f32 %v455, %v457
    %v459 = vadd.f32 %v455, %v458
    %vm460 = vweird.f32 %v451
    %vm461 = vweird.f32 %v455
    %vm462 = vmor %vm460, %vm461
    %v463 = vsel %vm462, %v455, %v459
    %v464 = vand.u32 2147483647, %v451
    %vm465 = vcmp.eq.f32.partialorder %v464, 8.507059e+37
    %v466 = vand.u32 %v451, 2147483648
    %v467 = vor.u32 1.1754944e-38, %v466
    %v468 = vsel %vm465, %v467, %v463
    %v469 = vmul.f32 1.0, %v468
    %v470 = vrcp.pop %v454
    %v471 = vmul.f32 %v454, %v470
    %v472 = vsub.f32 1.0, %v471
    %v473 = vmul.f32 %v470, %v472
    %v474 = vadd.f32 %v470, %v473
    %vm475 = vweird.f32 %v454
    %vm476 = vweird.f32 %v470
    %vm477 = vmor %vm475, %vm476
    %v478 = vsel %vm477, %v470, %v474
    %v479 = vand.u32 2147483647, %v454
    %vm480 = vcmp.eq.f32.partialorder %v479, 8.507059e+37
    %v481 = vand.u32 %v454, 2147483648
    %v482 = vor.u32 1.1754944e-38, %v481
    %v483 = vsel %vm480, %v482, %v478
    %v484 = vmul.f32 1.0, %v483
    %v485 = vmul.f32 %v446, %v469
    %v486 = vmul.f32 %v448, %v484
    %487 = vrot.lane.b32.xlu0 %v140, 48
    %v488 = vpop.permute.xlu0 %487
    %489 = vrot.lane.b32.xlu0 %v143, 48
    %v490 = vpop.permute.xlu0 %489
    %v494 = vsel %vm188, %v485, 0
    %v497 = vsel %vm188, %v486, 0
    %499 = vmatpush.msra.mxu0 0.0
    %500 = vmatpush.msra.mxu0 0.0
    %501 = vmatpush.msra.mxu0 0.0
    %502 = vmatpush.msra.mxu0 0.0
    %503 = vmatpush.msra.mxu0 0.0
    %504 = vmatpush.msra.mxu0 0.0
    %505 = vmatpush.msra.mxu0 0.0
    %506 = vmatpush.msra.mxu0 0.0
    %507 = vmatpush.msra.mxu0 0.0
    %508 = vmatpush.msra.mxu0 0.0
    %509 = vmatpush.msra.mxu0 0.0
    %510 = vmatpush.msra.mxu0 0.0
    %511 = vmatpush.msra.mxu0 0.0
    %512 = vmatpush.msra.mxu0 0.0
    %513 = vmatpush.msra.mxu0 %v490
    %514 = vmatpush.msra.mxu0 %v488
    %515 = vmatmul.f32.gmra.mxu0 %v494
    %v516 = vpop.f32.mrf.mxu0
    %v517 = vadd.f32 0.0, %v516
    %518 = vmatmul.f32.gmra.mxu0 %v497
    %v519 = vpop.f32.mrf.mxu0
    %v520 = vadd.f32 0.0, %v519
    %521 = vdwg.mxu0
    %522 = vrot.lane.b32.xlu0 %v146, 104
    %v523 = vpop.permute.xlu0 %522
    %524 = vrot.lane.b32.xlu0 %v147, 104
    %v525 = vpop.permute.xlu0 %524
    %526 = vrot.lane.b32.xlu0 %v140, 72
    %v527 = vpop.permute.xlu0 %526
    %528 = vrot.lane.b32.xlu0 %v143, 72
    %v529 = vpop.permute.xlu0 %528
    %v530 = vsel %vm154, %v523, 0
    %v532 = vsel %vm154, %v525, 0
    %v534 = vsel %vm154, %v527, 0
    %v536 = vsel %vm154, %v529, 0
    %538 = vmatpush.xpose.msra.mxu0 0.0
    %539 = vmatpush.xpose.msra.mxu0 0.0
    %540 = vmatpush.xpose.msra.mxu0 0.0
    %541 = vmatpush.xpose.msra.mxu0 0.0
    %542 = vmatpush.xpose.msra.mxu0 0.0
    %543 = vmatpush.xpose.msra.mxu0 0.0
    %544 = vmatpush.xpose.msra.mxu0 0.0
    %545 = vmatpush.xpose.msra.mxu0 0.0
    %546 = vmatpush.xpose.msra.mxu0 0.0
    %547 = vmatpush.xpose.msra.mxu0 0.0
    %548 = vmatpush.xpose.msra.mxu0 0.0
    %549 = vmatpush.xpose.msra.mxu0 0.0
    %550 = vmatpush.xpose.msra.mxu0 0.0
    %551 = vmatpush.xpose.msra.mxu0 0.0
    %552 = vmatpush.xpose.msra.mxu0 %v536
    %553 = vmatpush.xpose.msra.mxu0 %v534
    %554 = vmatmul.f32.gmra.mxu0 %v530
    %v555 = vpop.f32.mrf.mxu0
    %v556 = vadd.f32 %v105, %v555
    %557 = vmatmul.f32.gmra.mxu0 %v532
    %v558 = vpop.f32.mrf.mxu0
    %v559 = vadd.f32 %v106, %v558
    %560 = vdwg.mxu0
    %v561 = vsel %vm188, %v556, -inf
    %562 = vmax.xlane.f32.xlu0 %v561
    %v563 = vpop.xlane.xlu0 %562
    %v564 = vsel %vm188, %v559, -inf
    %565 = vmax.xlane.f32.xlu0 %v564
    %v566 = vpop.xlane.xlu0 %565
    %v567 = vsub.f32 %v556, %v563
    %v568 = vsub.f32 %v559, %v566
    %v569 = vmul.f32 %v567, 1.442695
    %v570 = vpow.pop %v569
    %v571 = vmul.f32 %v568, 1.442695
    %v572 = vpow.pop %v571
    %v573 = vsel %vm188, %v570, 0.0
    %574 = vadd.xlane.f32.xlu0 %v573
    %v575 = vpop.xlane.xlu0 %574
    %v576 = vsel %vm188, %v572, 0.0
    %577 = vadd.xlane.f32.xlu0 %v576
    %v578 = vpop.xlane.xlu0 %577
    %v579 = vrcp.pop %v575
    %v580 = vmul.f32 %v575, %v579
    %v581 = vsub.f32 1.0, %v580
    %v582 = vmul.f32 %v579, %v581
    %v583 = vadd.f32 %v579, %v582
    %vm584 = vweird.f32 %v575
    %vm585 = vweird.f32 %v579
    %vm586 = vmor %vm584, %vm585
    %v587 = vsel %vm586, %v579, %v583
    %v588 = vand.u32 2147483647, %v575
    %vm589 = vcmp.eq.f32.partialorder %v588, 8.507059e+37
    %v590 = vand.u32 %v575, 2147483648
    %v591 = vor.u32 1.1754944e-38, %v590
    %v592 = vsel %vm589, %v591, %v587
    %v593 = vmul.f32 1.0, %v592
    %v594 = vrcp.pop %v578
    %v595 = vmul.f32 %v578, %v594
    %v596 = vsub.f32 1.0, %v595
    %v597 = vmul.f32 %v594, %v596
    %v598 = vadd.f32 %v594, %v597
    %vm599 = vweird.f32 %v578
    %vm600 = vweird.f32 %v594
    %vm601 = vmor %vm599, %vm600
    %v602 = vsel %vm601, %v594, %v598
    %v603 = vand.u32 2147483647, %v578
    %vm604 = vcmp.eq.f32.partialorder %v603, 8.507059e+37
    %v605 = vand.u32 %v578, 2147483648
    %v606 = vor.u32 1.1754944e-38, %v605
    %v607 = vsel %vm604, %v606, %v602
    %v608 = vmul.f32 1.0, %v607
    %v609 = vmul.f32 %v570, %v593
    %v610 = vmul.f32 %v572, %v608
    %611 = vrot.lane.b32.xlu0 %v140, 40
    %v612 = vpop.permute.xlu0 %611
    %613 = vrot.lane.b32.xlu0 %v143, 40
    %v614 = vpop.permute.xlu0 %613
    %v618 = vsel %vm188, %v609, 0
    %v621 = vsel %vm188, %v610, 0
    %623 = vmatpush.msra.mxu0 0.0
    %624 = vmatpush.msra.mxu0 0.0
    %625 = vmatpush.msra.mxu0 0.0
    %626 = vmatpush.msra.mxu0 0.0
    %627 = vmatpush.msra.mxu0 0.0
    %628 = vmatpush.msra.mxu0 0.0
    %629 = vmatpush.msra.mxu0 0.0
    %630 = vmatpush.msra.mxu0 0.0
    %631 = vmatpush.msra.mxu0 0.0
    %632 = vmatpush.msra.mxu0 0.0
    %633 = vmatpush.msra.mxu0 0.0
    %634 = vmatpush.msra.mxu0 0.0
    %635 = vmatpush.msra.mxu0 0.0
    %636 = vmatpush.msra.mxu0 0.0
    %637 = vmatpush.msra.mxu0 %v614
    %638 = vmatpush.msra.mxu0 %v612
    %639 = vmatmul.f32.gmra.mxu0 %v618
    %v640 = vpop.f32.mrf.mxu0
    %v641 = vadd.f32 0.0, %v640
    %642 = vmatmul.f32.gmra.mxu0 %v621
    %v643 = vpop.f32.mrf.mxu0
    %v644 = vadd.f32 0.0, %v643
    %645 = vdwg.mxu0
    %648 = vrot.lane.b32.xlu0 %v393, 8
    %v649 = vpop.permute.xlu0 %648
    %650 = vrot.lane.b32.xlu0 %v396, 8
    %v651 = vpop.permute.xlu0 %650
    %656 = vrot.lane.b32.xlu0 %v517, 16
    %v657 = vpop.permute.xlu0 %656
    %658 = vrot.lane.b32.xlu0 %v520, 16
    %v659 = vpop.permute.xlu0 %658
    %664 = vrot.lane.b32.xlu0 %v641, 24
    %v665 = vpop.permute.xlu0 %664
    %666 = vrot.lane.b32.xlu0 %v644, 24
    %v667 = vpop.permute.xlu0 %666
    %v670 = vsel %vm154, %v269, %v649
    %v671 = vsel %vm154, %v272, %v651
    %v672 = vsel %vm188, %v670, %v657
    %v673 = vsel %vm188, %v671, %v659
    %vm674 = vcmask 195584
    %v675 = vsel %vm674, %v672, %v665
    %v676 = vsel %vm674, %v673, %v667
    %v677 = vperm.slane %v145, 0
    %682 = vrot.lane.b32.xlu0 %v109, 32
    %v683 = vpop.permute.xlu0 %682
    %684 = vrot.lane.b32.xlu0 %v110, 32
    %v685 = vpop.permute.xlu0 %684
    %686 = vrot.lane.b32.xlu0 %v111, 32
    %v687 = vpop.permute.xlu0 %686
    %688 = vrot.lane.b32.xlu0 %v112, 32
    %v689 = vpop.permute.xlu0 %688
    %v695 = vsel %vm115, %v675, 0
    %v698 = vsel %vm115, %v676, 0
    %700 = vmatpush.msra.mxu0 0.0
    %701 = vmatpush.msra.mxu0 0.0
    %702 = vmatpush.msra.mxu0 0.0
    %703 = vmatpush.msra.mxu0 0.0
    %704 = vmatpush.msra.mxu0 0.0
    %705 = vmatpush.msra.mxu0 0.0
    %706 = vmatpush.msra.mxu0 0.0
    %707 = vmatpush.msra.mxu0 0.0
    %708 = vmatpush.msra.mxu0 0.0
    %709 = vmatpush.msra.mxu0 0.0
    %710 = vmatpush.msra.mxu0 0.0
    %711 = vmatpush.msra.mxu0 0.0
    %712 = vmatpush.msra.mxu0 %v689
    %713 = vmatpush.msra.mxu0 %v687
    %714 = vmatpush.msra.mxu0 %v685
    %715 = vmatpush.msra.mxu0 %v683
    %716 = vmatmul.f32.gmra.mxu0 %v695
    %v717 = vpop.f32.mrf.mxu0
    %v718 = vadd.f32 %v677, %v717
    %719 = vmatmul.f32.gmra.mxu0 %v698
    %v720 = vpop.f32.mrf.mxu0
    %v721 = vadd.f32 %v677, %v720
    %722 = vdwg.mxu0
    %v723 = vadd.f32 %v99, %v718
    %v724 = vadd.f32 %v100, %v721
    %v725 = vld [vmem:[#allocation10 + $0x7] sm:$0x1]
    %v726 = vld [vmem:[#allocation10 + $0x8] sm:$0x1]
    %v727 = vsel %vm115, %v723, 0.0
    %728 = vadd.xlane.f32.xlu0 %v727
    %v729 = vpop.xlane.xlu0 %728
    %v730 = vsel %vm115, %v724, 0.0
    %731 = vadd.xlane.f32.xlu0 %v730
    %v732 = vpop.xlane.xlu0 %731
    %v733 = vrcp.pop 32.0
    %v734 = vmul.f32 32.0, %v733
    %v735 = vsub.f32 1.0, %v734
    %v736 = vmul.f32 %v733, %v735
    %v737 = vadd.f32 %v733, %v736
    %vm738 = vweird.f32 %v733
    %v739 = vsel %vm738, %v733, %v737
    %v740 = vmul.f32 %v729, %v739
    %v741 = vmul.f32 %v732, %v739
    %v742 = vsub.f32 %v723, %v740
    %v743 = vsub.f32 %v724, %v741
    %v744 = vmul.f32 %v742, %v742
    %v745 = vmul.f32 %v743, %v743
    %v746 = vsel %vm115, %v744, 0.0
    %747 = vadd.xlane.f32.xlu0 %v746
    %v748 = vpop.xlane.xlu0 %747
    %v749 = vsel %vm115, %v745, 0.0
    %750 = vadd.xlane.f32.xlu0 %v749
    %v751 = vpop.xlane.xlu0 %750
    %v752 = vmul.f32 %v748, 0.032258064
    %v753 = vmul.f32 %v751, 0.032258064
    %v754 = vrsqrt.pop %v752
    %v755 = vmul.f32 %v754, %v752
    %v756 = vmul.f32 %v755, %v754
    %v757 = vmul.f32 0.5, %v756
    %v758 = vsub.f32 1.5, %v757
    %v759 = vmul.f32 %v754, %v758
    %v760 = vmul.f32 %v752, %v759
    %vm761 = vcmp.eq.f32.partialorder %v752, inf
    %v762 = vsel %vm761, %v752, %v760
    %vm763 = vcmp.eq.f32.partialorder %v752, 0.0
    %v764 = vand.u32 %v752, 2147483648
    %v765 = vsel %vm763, %v764, %v762
    %v766 = vrsqrt.pop %v753
    %v767 = vmul.f32 %v766, %v753
    %v768 = vmul.f32 %v767, %v766
    %v769 = vmul.f32 0.5, %v768
    %v770 = vsub.f32 1.5, %v769
    %v771 = vmul.f32 %v766, %v770
    %v772 = vmul.f32 %v753, %v771
    %vm773 = vcmp.eq.f32.partialorder %v753, inf
    %v774 = vsel %vm773, %v753, %v772
    %vm775 = vcmp.eq.f32.partialorder %v753, 0.0
    %v776 = vand.u32 %v753, 2147483648
    %v777 = vsel %vm775, %v776, %v774
    %v778 = vadd.f32 %v765, 1e-06
    %v779 = vadd.f32 %v777, 1e-06
    %v780 = vrcp.pop %v778
    %v781 = vmul.f32 %v778, %v780
    %v782 = vsub.f32 1.0, %v781
    %v783 = vmul.f32 %v780, %v782
    %v784 = vadd.f32 %v780, %v783
    %vm785 = vweird.f32 %v778
    %vm786 = vweird.f32 %v780
    %vm787 = vmor %vm785, %vm786
    %v788 = vsel %vm787, %v780, %v784
    %v789 = vand.u32 2147483647, %v778
    %vm790 = vcmp.eq.f32.partialorder %v789, 8.507059e+37
    %v791 = vand.u32 %v778, 2147483648
    %v792 = vor.u32 1.1754944e-38, %v791
    %v793 = vsel %vm790, %v792, %v788
    %v794 = vmul.f32 1.0, %v793
    %v795 = vrcp.pop %v779
    %v796 = vmul.f32 %v779, %v795
    %v797 = vsub.f32 1.0, %v796
    %v798 = vmul.f32 %v795, %v797
    %v799 = vadd.f32 %v795, %v798
    %vm800 = vweird.f32 %v779
    %vm801 = vweird.f32 %v795
    %vm802 = vmor %vm800, %vm801
    %v803 = vsel %vm802, %v795, %v799
    %v804 = vand.u32 2147483647, %v779
    %vm805 = vcmp.eq.f32.partialorder %v804, 8.507059e+37
    %v806 = vand.u32 %v779, 2147483648
    %v807 = vor.u32 1.1754944e-38, %v806
    %v808 = vsel %vm805, %v807, %v803
    %v809 = vmul.f32 1.0, %v808
    %v810 = vperm.slane %v725, 0
    %v811 = vmul.f32 %v810, %v742
    %v812 = vmul.f32 %v810, %v743
    %v813 = vmul.f32 %v811, %v794
    %v814 = vmul.f32 %v812, %v809
    %v815 = vperm.slane %v726, 0
    %v816 = vadd.f32 %v813, %v815
    %v817 = vadd.f32 %v814, %v815
    %v818 = vld [vmem:[#allocation8 + $0x20] sm:$0xff]
    %v819 = vld [vmem:[#allocation8 + $0x28] sm:$0xff]
    %v820 = vld [vmem:[#allocation8 + $0x30] sm:$0xff]
    %v821 = vld [vmem:[#allocation8 + $0x38] sm:$0xff]
    %v822 = vld [vmem:[#allocation10 + $0x2] sm:$0x1]
    %v823 = vperm.slane %v822, 0
    %v825 = vsel %vm115, %v816, 0
    %v828 = vsel %vm115, %v817, 0
    %830 = vmatpush.msra.mxu0 0.0
    %831 = vmatpush.msra.mxu0 0.0
    %832 = vmatpush.msra.mxu0 0.0
    %833 = vmatpush.msra.mxu0 0.0
    %834 = vmatpush.msra.mxu0 0.0
    %835 = vmatpush.msra.mxu0 0.0
    %836 = vmatpush.msra.mxu0 0.0
    %837 = vmatpush.msra.mxu0 0.0
    %838 = vmatpush.msra.mxu0 0.0
    %839 = vmatpush.msra.mxu0 0.0
    %840 = vmatpush.msra.mxu0 0.0
    %841 = vmatpush.msra.mxu0 0.0
    %842 = vmatpush.msra.mxu0 %v821
    %843 = vmatpush.msra.mxu0 %v820
    %844 = vmatpush.msra.mxu0 %v819
    %845 = vmatpush.msra.mxu0 %v818
    %846 = vmatmul.f32.gmra.mxu0 %v825
    %v847 = vpop.f32.mrf.mxu0
    %v848 = vadd.f32 %v823, %v847
    %849 = vmatmul.f32.gmra.mxu0 %v828
    %v850 = vpop.f32.mrf.mxu0
    %v851 = vadd.f32 %v823, %v850
    %852 = vdwg.mxu0
    %v853 = vld [vmem:[#allocation10 + $0x3] sm:$0x1]
    %v854 = vperm.slane %v853, 0
    %859 = vrot.lane.b32.xlu0 %v818, 96
    %v860 = vpop.permute.xlu0 %859
    %861 = vrot.lane.b32.xlu0 %v819, 96
    %v862 = vpop.permute.xlu0 %861
    %863 = vrot.lane.b32.xlu0 %v820, 96
    %v864 = vpop.permute.xlu0 %863
    %865 = vrot.lane.b32.xlu0 %v821, 96
    %v866 = vpop.permute.xlu0 %865
    %v872 = vsel %vm115, %v101, 0
    %v875 = vsel %vm115, %v102, 0
    %v878 = vsel %vm115, %v103, 0
    %v881 = vsel %vm115, %v104, 0
    %883 = vmatpush.msra.mxu0 0.0
    %884 = vmatpush.msra.mxu0 0.0
    %885 = vmatpush.msra.mxu0 0.0
    %886 = vmatpush.msra.mxu0 0.0
    %887 = vmatpush.msra.mxu0 0.0
    %888 = vmatpush.msra.mxu0 0.0
    %889 = vmatpush.msra.mxu0 0.0
    %890 = vmatpush.msra.mxu0 0.0
    %891 = vmatpush.msra.mxu0 0.0
    %892 = vmatpush.msra.mxu0 0.0
    %893 = vmatpush.msra.mxu0 0.0
    %894 = vmatpush.msra.mxu0 0.0
    %895 = vmatpush.msra.mxu0 %v866
    %896 = vmatpush.msra.mxu0 %v864
    %897 = vmatpush.msra.mxu0 %v862
    %898 = vmatpush.msra.mxu0 %v860
    %899 = vmatmul.f32.gmra.mxu0 %v872
    %v900 = vpop.f32.mrf.mxu0
    %v901 = vadd.f32 %v854, %v900
    %902 = vmatmul.f32.gmra.mxu0 %v875
    %v903 = vpop.f32.mrf.mxu0
    %v904 = vadd.f32 %v854, %v903
    %905 = vmatmul.f32.gmra.mxu0 %v878
    %v906 = vpop.f32.mrf.mxu0
    %v907 = vadd.f32 %v854, %v906
    %908 = vmatmul.f32.gmra.mxu0 %v881
    %v909 = vpop.f32.mrf.mxu0
    %v910 = vadd.f32 %v854, %v909
    %911 = vdwg.mxu0
    %v912 = vld [vmem:[#allocation10 + $0x4] sm:$0x1]
    %v913 = vmul.f32 %v848, 0.35355338
    %v914 = vmul.f32 %v851, 0.35355338
    %v916 = vsel %vm154, %v913, 0
    %v919 = vsel %vm154, %v914, 0
    %v922 = vsel %vm154, %v901, 0
    %v925 = vsel %vm154, %v904, 0
    %v928 = vsel %vm154, %v907, 0
    %v931 = vsel %vm154, %v910, 0
    %933 = vmatpush.xpose.msra.mxu0 0.0
    %934 = vmatpush.xpose.msra.mxu0 0.0
    %935 = vmatpush.xpose.msra.mxu0 0.0
    %936 = vmatpush.xpose.msra.mxu0 0.0
    %937 = vmatpush.xpose.msra.mxu0 0.0
    %938 = vmatpush.xpose.msra.mxu0 0.0
    %939 = vmatpush.xpose.msra.mxu0 0.0
    %940 = vmatpush.xpose.msra.mxu0 0.0
    %941 = vmatpush.xpose.msra.mxu0 0.0
    %942 = vmatpush.xpose.msra.mxu0 0.0
    %943 = vmatpush.xpose.msra.mxu0 0.0
    %944 = vmatpush.xpose.msra.mxu0 0.0
    %945 = vmatpush.xpose.msra.mxu0 %v931
    %946 = vmatpush.xpose.msra.mxu0 %v928
    %947 = vmatpush.xpose.msra.mxu0 %v925
    %948 = vmatpush.xpose.msra.mxu0 %v922
    %949 = vmatmul.f32.gmra.mxu0 %v916
    %v950 = vpop.f32.mrf.mxu0
    %v951 = vadd.f32 %v107, %v950
    %952 = vmatmul.f32.gmra.mxu0 %v919
    %v953 = vpop.f32.mrf.mxu0
    %v954 = vadd.f32 %v108, %v953
    %955 = vdwg.mxu0
    %v956 = vsel %vm115, %v951, -inf
    %957 = vmax.xlane.f32.xlu0 %v956
    %v958 = vpop.xlane.xlu0 %957
    %v959 = vsel %vm115, %v954, -inf
    %960 = vmax.xlane.f32.xlu0 %v959
    %v961 = vpop.xlane.xlu0 %960
    %v962 = vsub.f32 %v951, %v958
    %v963 = vsub.f32 %v954, %v961
    %v964 = vmul.f32 %v962, 1.442695
    %v965 = vpow.pop %v964
    %v966 = vmul.f32 %v963, 1.442695
    %v967 = vpow.pop %v966
    %v968 = vsel %vm115, %v965, 0.0
    %969 = vadd.xlane.f32.xlu0 %v968
    %v970 = vpop.xlane.xlu0 %969
    %v971 = vsel %vm115, %v967, 0.0
    %972 = vadd.xlane.f32.xlu0 %v971
    %v973 = vpop.xlane.xlu0 %972
    %v974 = vrcp.pop %v970
    %v975 = vmul.f32 %v970, %v974
    %v976 = vsub.f32 1.0, %v975
    %v977 = vmul.f32 %v974, %v976
    %v978 = vadd.f32 %v974, %v977
    %vm979 = vweird.f32 %v970
    %vm980 = vweird.f32 %v974
    %vm981 = vmor %vm979, %vm980
    %v982 = vsel %vm981, %v974, %v978
    %v983 = vand.u32 2147483647, %v970
    %vm984 = vcmp.eq.f32.partialorder %v983, 8.507059e+37
    %v985 = vand.u32 %v970, 2147483648
    %v986 = vor.u32 1.1754944e-38, %v985
    %v987 = vsel %vm984, %v986, %v982
    %v988 = vmul.f32 1.0, %v987
    %v989 = vrcp.pop %v973
    %v990 = vmul.f32 %v973, %v989
    %v991 = vsub.f32 1.0, %v990
    %v992 = vmul.f32 %v989, %v991
    %v993 = vadd.f32 %v989, %v992
    %vm994 = vweird.f32 %v973
    %vm995 = vweird.f32 %v989
    %vm996 = vmor %vm994, %vm995
    %v997 = vsel %vm996, %v989, %v993
    %v998 = vand.u32 2147483647, %v973
    %vm999 = vcmp.eq.f32.partialorder %v998, 8.507059e+37
    %v1000 = vand.u32 %v973, 2147483648
    %v1001 = vor.u32 1.1754944e-38, %v1000
    %v1002 = vsel %vm999, %v1001, %v997
    %v1003 = vmul.f32 1.0, %v1002
    %v1004 = vmul.f32 %v965, %v988
    %v1005 = vmul.f32 %v967, %v1003
    %1006 = vrot.lane.b32.xlu0 %v901, 96
    %v1007 = vpop.permute.xlu0 %1006
    %1008 = vrot.lane.b32.xlu0 %v904, 96
    %v1009 = vpop.permute.xlu0 %1008
    %1010 = vrot.lane.b32.xlu0 %v907, 96
    %v1011 = vpop.permute.xlu0 %1010
    %1012 = vrot.lane.b32.xlu0 %v910, 96
    %v1013 = vpop.permute.xlu0 %1012
    %v1019 = vsel %vm115, %v1004, 0
    %v1022 = vsel %vm115, %v1005, 0
    %1024 = vmatpush.msra.mxu0 0.0
    %1025 = vmatpush.msra.mxu0 0.0
    %1026 = vmatpush.msra.mxu0 0.0
    %1027 = vmatpush.msra.mxu0 0.0
    %1028 = vmatpush.msra.mxu0 0.0
    %1029 = vmatpush.msra.mxu0 0.0
    %1030 = vmatpush.msra.mxu0 0.0
    %1031 = vmatpush.msra.mxu0 0.0
    %1032 = vmatpush.msra.mxu0 0.0
    %1033 = vmatpush.msra.mxu0 0.0
    %1034 = vmatpush.msra.mxu0 0.0
    %1035 = vmatpush.msra.mxu0 0.0
    %1036 = vmatpush.msra.mxu0 %v1013
    %1037 = vmatpush.msra.mxu0 %v1011
    %1038 = vmatpush.msra.mxu0 %v1009
    %1039 = vmatpush.msra.mxu0 %v1007
    %1040 = vmatmul.f32.gmra.mxu0 %v1019
    %v1041 = vpop.f32.mrf.mxu0
    %v1042 = vadd.f32 0.0, %v1041
    %1043 = vmatmul.f32.gmra.mxu0 %v1022
    %v1044 = vpop.f32.mrf.mxu0
    %v1045 = vadd.f32 0.0, %v1044
    %1046 = vdwg.mxu0
    %1047 = vrot.lane.b32.xlu0 %v913, 120
    %v1048 = vpop.permute.xlu0 %1047
    %1049 = vrot.lane.b32.xlu0 %v914, 120
    %v1050 = vpop.permute.xlu0 %1049
    %1051 = vrot.lane.b32.xlu0 %v901, 120
    %v1052 = vpop.permute.xlu0 %1051
    %1053 = vrot.lane.b32.xlu0 %v904, 120
    %v1054 = vpop.permute.xlu0 %1053
    %1055 = vrot.lane.b32.xlu0 %v907, 120
    %v1056 = vpop.permute.xlu0 %1055
    %1057 = vrot.lane.b32.xlu0 %v910, 120
    %v1058 = vpop.permute.xlu0 %1057
    %v1059 = vsel %vm154, %v1048, 0
    %v1061 = vsel %vm154, %v1050, 0
    %v1063 = vsel %vm154, %v1052, 0
    %v1065 = vsel %vm154, %v1054, 0
    %v1067 = vsel %vm154, %v1056, 0
    %v1069 = vsel %vm154, %v1058, 0
    %1071 = vmatpush.xpose.msra.mxu0 0.0
    %1072 = vmatpush.xpose.msra.mxu0 0.0
    %1073 = vmatpush.xpose.msra.mxu0 0.0
    %1074 = vmatpush.xpose.msra.mxu0 0.0
    %1075 = vmatpush.xpose.msra.mxu0 0.0
    %1076 = vmatpush.xpose.msra.mxu0 0.0
    %1077 = vmatpush.xpose.msra.mxu0 0.0
    %1078 = vmatpush.xpose.msra.mxu0 0.0
    %1079 = vmatpush.xpose.msra.mxu0 0.0
    %1080 = vmatpush.xpose.msra.mxu0 0.0
    %1081 = vmatpush.xpose.msra.mxu0 0.0
    %1082 = vmatpush.xpose.msra.mxu0 0.0
    %1083 = vmatpush.xpose.msra.mxu0 %v1069
    %1084 = vmatpush.xpose.msra.mxu0 %v1067
    %1085 = vmatpush.xpose.msra.mxu0 %v1065
    %1086 = vmatpush.xpose.msra.mxu0 %v1063
    %1087 = vmatmul.f32.gmra.mxu0 %v1059
    %v1088 = vpop.f32.mrf.mxu0
    %v1089 = vadd.f32 %v107, %v1088
    %1090 = vmatmul.f32.gmra.mxu0 %v1061
    %v1091 = vpop.f32.mrf.mxu0
    %v1092 = vadd.f32 %v108, %v1091
    %1093 = vdwg.mxu0
    %v1094 = vsel %vm115, %v1089, -inf
    %1095 = vmax.xlane.f32.xlu0 %v1094
    %v1096 = vpop.xlane.xlu0 %1095
    %v1097 = vsel %vm115, %v1092, -inf
    %1098 = vmax.xlane.f32.xlu0 %v1097
    %v1099 = vpop.xlane.xlu0 %1098
    %v1100 = vsub.f32 %v1089, %v1096
    %v1101 = vsub.f32 %v1092, %v1099
    %v1102 = vmul.f32 %v1100, 1.442695
    %v1103 = vpow.pop %v1102
    %v1104 = vmul.f32 %v1101, 1.442695
    %v1105 = vpow.pop %v1104
    %v1106 = vsel %vm115, %v1103, 0.0
    %1107 = vadd.xlane.f32.xlu0 %v1106
    %v1108 = vpop.xlane.xlu0 %1107
    %v1109 = vsel %vm115, %v1105, 0.0
    %1110 = vadd.xlane.f32.xlu0 %v1109
    %v1111 = vpop.xlane.xlu0 %1110
    %v1112 = vrcp.pop %v1108
    %v1113 = vmul.f32 %v1108, %v1112
    %v1114 = vsub.f32 1.0, %v1113
    %v1115 = vmul.f32 %v1112, %v1114
    %v1116 = vadd.f32 %v1112, %v1115
    %vm1117 = vweird.f32 %v1108
    %vm1118 = vweird.f32 %v1112
    %vm1119 = vmor %vm1117, %vm1118
    %v1120 = vsel %vm1119, %v1112, %v1116
    %v1121 = vand.u32 2147483647, %v1108
    %vm1122 = vcmp.eq.f32.partialorder %v1121, 8.507059e+37
    %v1123 = vand.u32 %v1108, 2147483648
    %v1124 = vor.u32 1.1754944e-38, %v1123
    %v1125 = vsel %vm1122, %v1124, %v1120
    %v1126 = vmul.f32 1.0, %v1125
    %v1127 = vrcp.pop %v1111
    %v1128 = vmul.f32 %v1111, %v1127
    %v1129 = vsub.f32 1.0, %v1128
    %v1130 = vmul.f32 %v1127, %v1129
    %v1131 = vadd.f32 %v1127, %v1130
    %vm1132 = vweird.f32 %v1111
    %vm1133 = vweird.f32 %v1127
    %vm1134 = vmor %vm1132, %vm1133
    %v1135 = vsel %vm1134, %v1127, %v1131
    %v1136 = vand.u32 2147483647, %v1111
    %vm1137 = vcmp.eq.f32.partialorder %v1136, 8.507059e+37
    %v1138 = vand.u32 %v1111, 2147483648
    %v1139 = vor.u32 1.1754944e-38, %v1138
    %v1140 = vsel %vm1137, %v1139, %v1135
    %v1141 = vmul.f32 1.0, %v1140
    %v1142 = vmul.f32 %v1103, %v1126
    %v1143 = vmul.f32 %v1105, %v1141
    %1144 = vrot.lane.b32.xlu0 %v901, 88
    %v1145 = vpop.permute.xlu0 %1144
    %1146 = vrot.lane.b32.xlu0 %v904, 88
    %v1147 = vpop.permute.xlu0 %1146
    %1148 = vrot.lane.b32.xlu0 %v907, 88
    %v1149 = vpop.permute.xlu0 %1148
    %1150 = vrot.lane.b32.xlu0 %v910, 88
    %v1151 = vpop.permute.xlu0 %1150
    %v1157 = vsel %vm115, %v1142, 0
    %v1160 = vsel %vm115, %v1143, 0
    %1162 = vmatpush.msra.mxu0 0.0
    %1163 = vmatpush.msra.mxu0 0.0
    %1164 = vmatpush.msra.mxu0 0.0
    %1165 = vmatpush.msra.mxu0 0.0
    %1166 = vmatpush.msra.mxu0 0.0
    %1167 = vmatpush.msra.mxu0 0.0
    %1168 = vmatpush.msra.mxu0 0.0
    %1169 = vmatpush.msra.mxu0 0.0
    %1170 = vmatpush.msra.mxu0 0.0
    %1171 = vmatpush.msra.mxu0 0.0
    %1172 = vmatpush.msra.mxu0 0.0
    %1173 = vmatpush.msra.mxu0 0.0
    %1174 = vmatpush.msra.mxu0 %v1151
    %1175 = vmatpush.msra.mxu0 %v1149
    %1176 = vmatpush.msra.mxu0 %v1147
    %1177 = vmatpush.msra.mxu0 %v1145
    %1178 = vmatmul.f32.gmra.mxu0 %v1157
    %v1179 = vpop.f32.mrf.mxu0
    %v1180 = vadd.f32 0.0, %v1179
    %1181 = vmatmul.f32.gmra.mxu0 %v1160
    %v1182 = vpop.f32.mrf.mxu0
    %v1183 = vadd.f32 0.0, %v1182
    %1184 = vdwg.mxu0
    %1185 = vrot.lane.b32.xlu0 %v913, 112
    %v1186 = vpop.permute.xlu0 %1185
    %1187 = vrot.lane.b32.xlu0 %v914, 112
    %v1188 = vpop.permute.xlu0 %1187
    %1189 = vrot.lane.b32.xlu0 %v901, 112
    %v1190 = vpop.permute.xlu0 %1189
    %1191 = vrot.lane.b32.xlu0 %v904, 112
    %v1192 = vpop.permute.xlu0 %1191
    %1193 = vrot.lane.b32.xlu0 %v907, 112
    %v1194 = vpop.permute.xlu0 %1193
    %1195 = vrot.lane.b32.xlu0 %v910, 112
    %v1196 = vpop.permute.xlu0 %1195
    %v1197 = vsel %vm154, %v1186, 0
    %v1199 = vsel %vm154, %v1188, 0
    %v1201 = vsel %vm154, %v1190, 0
    %v1203 = vsel %vm154, %v1192, 0
    %v1205 = vsel %vm154, %v1194, 0
    %v1207 = vsel %vm154, %v1196, 0
    %1209 = vmatpush.xpose.msra.mxu0 0.0
    %1210 = vmatpush.xpose.msra.mxu0 0.0
    %1211 = vmatpush.xpose.msra.mxu0 0.0
    %1212 = vmatpush.xpose.msra.mxu0 0.0
    %1213 = vmatpush.xpose.msra.mxu0 0.0
    %1214 = vmatpush.xpose.msra.mxu0 0.0
    %1215 = vmatpush.xpose.msra.mxu0 0.0
    %1216 = vmatpush.xpose.msra.mxu0 0.0
    %1217 = vmatpush.xpose.msra.mxu0 0.0
    %1218 = vmatpush.xpose.msra.mxu0 0.0
    %1219 = vmatpush.xpose.msra.mxu0 0.0
    %1220 = vmatpush.xpose.msra.mxu0 0.0
    %1221 = vmatpush.xpose.msra.mxu0 %v1207
    %1222 = vmatpush.xpose.msra.mxu0 %v1205
    %1223 = vmatpush.xpose.msra.mxu0 %v1203
    %1224 = vmatpush.xpose.msra.mxu0 %v1201
    %1225 = vmatmul.f32.gmra.mxu0 %v1197
    %v1226 = vpop.f32.mrf.mxu0
    %v1227 = vadd.f32 %v107, %v1226
    %1228 = vmatmul.f32.gmra.mxu0 %v1199
    %v1229 = vpop.f32.mrf.mxu0
    %v1230 = vadd.f32 %v108, %v1229
    %1231 = vdwg.mxu0
    %v1232 = vsel %vm115, %v1227, -inf
    %1233 = vmax.xlane.f32.xlu0 %v1232
    %v1234 = vpop.xlane.xlu0 %1233
    %v1235 = vsel %vm115, %v1230, -inf
    %1236 = vmax.xlane.f32.xlu0 %v1235
    %v1237 = vpop.xlane.xlu0 %1236
    %v1238 = vsub.f32 %v1227, %v1234
    %v1239 = vsub.f32 %v1230, %v1237
    %v1240 = vmul.f32 %v1238, 1.442695
    %v1241 = vpow.pop %v1240
    %v1242 = vmul.f32 %v1239, 1.442695
    %v1243 = vpow.pop %v1242
    %v1244 = vsel %vm115, %v1241, 0.0
    %1245 = vadd.xlane.f32.xlu0 %v1244
    %v1246 = vpop.xlane.xlu0 %1245
    %v1247 = vsel %vm115, %v1243, 0.0
    %1248 = vadd.xlane.f32.xlu0 %v1247
    %v1249 = vpop.xlane.xlu0 %1248
    %v1250 = vrcp.pop %v1246
    %v1251 = vmul.f32 %v1246, %v1250
    %v1252 = vsub.f32 1.0, %v1251
    %v1253 = vmul.f32 %v1250, %v1252
    %v1254 = vadd.f32 %v1250, %v1253
    %vm1255 = vweird.f32 %v1246
    %vm1256 = vweird.f32 %v1250
    %vm1257 = vmor %vm1255, %vm1256
    %v1258 = vsel %vm1257, %v1250, %v1254
    %v1259 = vand.u32 2147483647, %v1246
    %vm1260 = vcmp.eq.f32.partialorder %v1259, 8.507059e+37
    %v1261 = vand.u32 %v1246, 2147483648
    %v1262 = vor.u32 1.1754944e-38, %v1261
    %v1263 = vsel %vm1260, %v1262, %v1258
    %v1264 = vmul.f32 1.0, %v1263
    %v1265 = vrcp.pop %v1249
    %v1266 = vmul.f32 %v1249, %v1265
    %v1267 = vsub.f32 1.0, %v1266
    %v1268 = vmul.f32 %v1265, %v1267
    %v1269 = vadd.f32 %v1265, %v1268
    %vm1270 = vweird.f32 %v1249
    %vm1271 = vweird.f32 %v1265
    %vm1272 = vmor %vm1270, %vm1271
    %v1273 = vsel %vm1272, %v1265, %v1269
    %v1274 = vand.u32 2147483647, %v1249
    %vm1275 = vcmp.eq.f32.partialorder %v1274, 8.507059e+37
    %v1276 = vand.u32 %v1249, 2147483648
    %v1277 = vor.u32 1.1754944e-38, %v1276
    %v1278 = vsel %vm1275, %v1277, %v1273
    %v1279 = vmul.f32 1.0, %v1278
    %v1280 = vmul.f32 %v1241, %v1264
    %v1281 = vmul.f32 %v1243, %v1279
    %1282 = vrot.lane.b32.xlu0 %v901, 80
    %v1283 = vpop.permute.xlu0 %1282
    %1284 = vrot.lane.b32.xlu0 %v904, 80
    %v1285 = vpop.permute.xlu0 %1284
    %1286 = vrot.lane.b32.xlu0 %v907, 80
    %v1287 = vpop.permute.xlu0 %1286
    %1288 = vrot.lane.b32.xlu0 %v910, 80
    %v1289 = vpop.permute.xlu0 %1288
    %v1295 = vsel %vm115, %v1280, 0
    %v1298 = vsel %vm115, %v1281, 0
    %1300 = vmatpush.msra.mxu0 0.0
    %1301 = vmatpush.msra.mxu0 0.0
    %1302 = vmatpush.msra.mxu0 0.0
    %1303 = vmatpush.msra.mxu0 0.0
    %1304 = vmatpush.msra.mxu0 0.0
    %1305 = vmatpush.msra.mxu0 0.0
    %1306 = vmatpush.msra.mxu0 0.0
    %1307 = vmatpush.msra.mxu0 0.0
    %1308 = vmatpush.msra.mxu0 0.0
    %1309 = vmatpush.msra.mxu0 0.0
    %1310 = vmatpush.msra.mxu0 0.0
    %1311 = vmatpush.msra.mxu0 0.0
    %1312 = vmatpush.msra.mxu0 %v1289
    %1313 = vmatpush.msra.mxu0 %v1287
    %1314 = vmatpush.msra.mxu0 %v1285
    %1315 = vmatpush.msra.mxu0 %v1283
    %1316 = vmatmul.f32.gmra.mxu0 %v1295
    %v1317 = vpop.f32.mrf.mxu0
    %v1318 = vadd.f32 0.0, %v1317
    %1319 = vmatmul.f32.gmra.mxu0 %v1298
    %v1320 = vpop.f32.mrf.mxu0
    %v1321 = vadd.f32 0.0, %v1320
    %1322 = vdwg.mxu0
    %1323 = vrot.lane.b32.xlu0 %v913, 104
    %v1324 = vpop.permute.xlu0 %1323
    %1325 = vrot.lane.b32.xlu0 %v914, 104
    %v1326 = vpop.permute.xlu0 %1325
    %1327 = vrot.lane.b32.xlu0 %v901, 104
    %v1328 = vpop.permute.xlu0 %1327
    %1329 = vrot.lane.b32.xlu0 %v904, 104
    %v1330 = vpop.permute.xlu0 %1329
    %1331 = vrot.lane.b32.xlu0 %v907, 104
    %v1332 = vpop.permute.xlu0 %1331
    %1333 = vrot.lane.b32.xlu0 %v910, 104
    %v1334 = vpop.permute.xlu0 %1333
    %v1335 = vsel %vm154, %v1324, 0
    %v1337 = vsel %vm154, %v1326, 0
    %v1339 = vsel %vm154, %v1328, 0
    %v1341 = vsel %vm154, %v1330, 0
    %v1343 = vsel %vm154, %v1332, 0
    %v1345 = vsel %vm154, %v1334, 0
    %1347 = vmatpush.xpose.msra.mxu0 0.0
    %1348 = vmatpush.xpose.msra.mxu0 0.0
    %1349 = vmatpush.xpose.msra.mxu0 0.0
    %1350 = vmatpush.xpose.msra.mxu0 0.0
    %1351 = vmatpush.xpose.msra.mxu0 0.0
    %1352 = vmatpush.xpose.msra.mxu0 0.0
    %1353 = vmatpush.xpose.msra.mxu0 0.0
    %1354 = vmatpush.xpose.msra.mxu0 0.0
    %1355 = vmatpush.xpose.msra.mxu0 0.0
    %1356 = vmatpush.xpose.msra.mxu0 0.0
    %1357 = vmatpush.xpose.msra.mxu0 0.0
    %1358 = vmatpush.xpose.msra.mxu0 0.0
    %1359 = vmatpush.xpose.msra.mxu0 %v1345
    %1360 = vmatpush.xpose.msra.mxu0 %v1343
    %1361 = vmatpush.xpose.msra.mxu0 %v1341
    %1362 = vmatpush.xpose.msra.mxu0 %v1339
    %1363 = vmatmul.f32.gmra.mxu0 %v1335
    %v1364 = vpop.f32.mrf.mxu0
    %v1365 = vadd.f32 %v107, %v1364
    %1366 = vmatmul.f32.gmra.mxu0 %v1337
    %v1367 = vpop.f32.mrf.mxu0
    %v1368 = vadd.f32 %v108, %v1367
    %1369 = vdwg.mxu0
    %v1370 = vsel %vm115, %v1365, -inf
    %1371 = vmax.xlane.f32.xlu0 %v1370
    %v1372 = vpop.xlane.xlu0 %1371
    %v1373 = vsel %vm115, %v1368, -inf
    %1374 = vmax.xlane.f32.xlu0 %v1373
    %v1375 = vpop.xlane.xlu0 %1374
    %v1376 = vsub.f32 %v1365, %v1372
    %v1377 = vsub.f32 %v1368, %v1375
    %v1378 = vmul.f32 %v1376, 1.442695
    %v1379 = vpow.pop %v1378
    %v1380 = vmul.f32 %v1377, 1.442695
    %v1381 = vpow.pop %v1380
    %v1382 = vsel %vm115, %v1379, 0.0
    %1383 = vadd.xlane.f32.xlu0 %v1382
    %v1384 = vpop.xlane.xlu0 %1383
    %v1385 = vsel %vm115, %v1381, 0.0
    %1386 = vadd.xlane.f32.xlu0 %v1385
    %v1387 = vpop.xlane.xlu0 %1386
    %v1388 = vrcp.pop %v1384
    %v1389 = vmul.f32 %v1384, %v1388
    %v1390 = vsub.f32 1.0, %v1389
    %v1391 = vmul.f32 %v1388, %v1390
    %v1392 = vadd.f32 %v1388, %v1391
    %vm1393 = vweird.f32 %v1384
    %vm1394 = vweird.f32 %v1388
    %vm1395 = vmor %vm1393, %vm1394
    %v1396 = vsel %vm1395, %v1388, %v1392
    %v1397 = vand.u32 2147483647, %v1384
    %vm1398 = vcmp.eq.f32.partialorder %v1397, 8.507059e+37
    %v1399 = vand.u32 %v1384, 2147483648
    %v1400 = vor.u32 1.1754944e-38, %v1399
    %v1401 = vsel %vm1398, %v1400, %v1396
    %v1402 = vmul.f32 1.0, %v1401
    %v1403 = vrcp.pop %v1387
    %v1404 = vmul.f32 %v1387, %v1403
    %v1405 = vsub.f32 1.0, %v1404
    %v1406 = vmul.f32 %v1403, %v1405
    %v1407 = vadd.f32 %v1403, %v1406
    %vm1408 = vweird.f32 %v1387
    %vm1409 = vweird.f32 %v1403
    %vm1410 = vmor %vm1408, %vm1409
    %v1411 = vsel %vm1410, %v1403, %v1407
    %v1412 = vand.u32 2147483647, %v1387
    %vm1413 = vcmp.eq.f32.partialorder %v1412, 8.507059e+37
    %v1414 = vand.u32 %v1387, 2147483648
    %v1415 = vor.u32 1.1754944e-38, %v1414
    %v1416 = vsel %vm1413, %v1415, %v1411
    %v1417 = vmul.f32 1.0, %v1416
    %v1418 = vmul.f32 %v1379, %v1402
    %v1419 = vmul.f32 %v1381, %v1417
    %1420 = vrot.lane.b32.xlu0 %v901, 72
    %v1421 = vpop.permute.xlu0 %1420
    %1422 = vrot.lane.b32.xlu0 %v904, 72
    %v1423 = vpop.permute.xlu0 %1422
    %1424 = vrot.lane.b32.xlu0 %v907, 72
    %v1425 = vpop.permute.xlu0 %1424
    %1426 = vrot.lane.b32.xlu0 %v910, 72
    %v1427 = vpop.permute.xlu0 %1426
    %v1433 = vsel %vm115, %v1418, 0
    %v1436 = vsel %vm115, %v1419, 0
    %1438 = vmatpush.msra.mxu0 0.0
    %1439 = vmatpush.msra.mxu0 0.0
    %1440 = vmatpush.msra.mxu0 0.0
    %1441 = vmatpush.msra.mxu0 0.0
    %1442 = vmatpush.msra.mxu0 0.0
    %1443 = vmatpush.msra.mxu0 0.0
    %1444 = vmatpush.msra.mxu0 0.0
    %1445 = vmatpush.msra.mxu0 0.0
    %1446 = vmatpush.msra.mxu0 0.0
    %1447 = vmatpush.msra.mxu0 0.0
    %1448 = vmatpush.msra.mxu0 0.0
    %1449 = vmatpush.msra.mxu0 0.0
    %1450 = vmatpush.msra.mxu0 %v1427
    %1451 = vmatpush.msra.mxu0 %v1425
    %1452 = vmatpush.msra.mxu0 %v1423
    %1453 = vmatpush.msra.mxu0 %v1421
    %1454 = vmatmul.f32.gmra.mxu0 %v1433
    %v1455 = vpop.f32.mrf.mxu0
    %v1456 = vadd.f32 0.0, %v1455
    %1457 = vmatmul.f32.gmra.mxu0 %v1436
    %v1458 = vpop.f32.mrf.mxu0
    %v1459 = vadd.f32 0.0, %v1458
    %1460 = vdwg.mxu0
    %1463 = vrot.lane.b32.xlu0 %v1180, 8
    %v1464 = vpop.permute.xlu0 %1463
    %1465 = vrot.lane.b32.xlu0 %v1183, 8
    %v1466 = vpop.permute.xlu0 %1465
    %1471 = vrot.lane.b32.xlu0 %v1318, 16
    %v1472 = vpop.permute.xlu0 %1471
    %1473 = vrot.lane.b32.xlu0 %v1321, 16
    %v1474 = vpop.permute.xlu0 %1473
    %1479 = vrot.lane.b32.xlu0 %v1456, 24
    %v1480 = vpop.permute.xlu0 %1479
    %1481 = vrot.lane.b32.xlu0 %v1459, 24
    %v1482 = vpop.permute.xlu0 %1481
    %v1485 = vsel %vm154, %v1042, %v1464
    %v1486 = vsel %vm154, %v1045, %v1466
    %v1487 = vsel %vm188, %v1485, %v1472
    %v1488 = vsel %vm188, %v1486, %v1474
    %v1489 = vsel %vm674, %v1487, %v1480
    %v1490 = vsel %vm674, %v1488, %v1482
    %v1491 = vperm.slane %v912, 0
    %1492 = vrot.lane.b32.xlu0 %v818, 32
    %v1493 = vpop.permute.xlu0 %1492
    %1494 = vrot.lane.b32.xlu0 %v819, 32
    %v1495 = vpop.permute.xlu0 %1494
    %1496 = vrot.lane.b32.xlu0 %v820, 32
    %v1497 = vpop.permute.xlu0 %1496
    %1498 = vrot.lane.b32.xlu0 %v821, 32
    %v1499 = vpop.permute.xlu0 %1498
    %v1505 = vsel %vm115, %v1489, 0
    %v1508 = vsel %vm115, %v1490, 0
    %1510 = vmatpush.msra.mxu0 0.0
    %1511 = vmatpush.msra.mxu0 0.0
    %1512 = vmatpush.msra.mxu0 0.0
    %1513 = vmatpush.msra.mxu0 0.0
    %1514 = vmatpush.msra.mxu0 0.0
    %1515 = vmatpush.msra.mxu0 0.0
    %1516 = vmatpush.msra.mxu0 0.0
    %1517 = vmatpush.msra.mxu0 0.0
    %1518 = vmatpush.msra.mxu0 0.0
    %1519 = vmatpush.msra.mxu0 0.0
    %1520 = vmatpush.msra.mxu0 0.0
    %1521 = vmatpush.msra.mxu0 0.0
    %1522 = vmatpush.msra.mxu0 %v1499
    %1523 = vmatpush.msra.mxu0 %v1497
    %1524 = vmatpush.msra.mxu0 %v1495
    %1525 = vmatpush.msra.mxu0 %v1493
    %1526 = vmatmul.f32.gmra.mxu0 %v1505
    %v1527 = vpop.f32.mrf.mxu0
    %v1528 = vadd.f32 %v1491, %v1527
    %1529 = vmatmul.f32.gmra.mxu0 %v1508
    %v1530 = vpop.f32.mrf.mxu0
    %v1531 = vadd.f32 %v1491, %v1530
    %1532 = vdwg.mxu0
    %v1533 = vadd.f32 %v816, %v1528
    %v1534 = vadd.f32 %v817, %v1531
    %v1535 = vld [vmem:[#allocation10 + $0x9] sm:$0x1]
    %v1536 = vld [vmem:[#allocation10 + $0xa] sm:$0x1]
    %v1537 = vsel %vm115, %v1533, 0.0
    %1538 = vadd.xlane.f32.xlu0 %v1537
    %v1539 = vpop.xlane.xlu0 %1538
    %v1540 = vsel %vm115, %v1534, 0.0
    %1541 = vadd.xlane.f32.xlu0 %v1540
    %v1542 = vpop.xlane.xlu0 %1541
    %v1543 = vmul.f32 %v1539, %v739
    %v1544 = vmul.f32 %v1542, %v739
    %v1545 = vsub.f32 %v1533, %v1543
    %v1546 = vsub.f32 %v1534, %v1544
    %v1547 = vmul.f32 %v1545, %v1545
    %v1548 = vmul.f32 %v1546, %v1546
    %v1549 = vsel %vm115, %v1547, 0.0
    %1550 = vadd.xlane.f32.xlu0 %v1549
    %v1551 = vpop.xlane.xlu0 %1550
    %v1552 = vsel %vm115, %v1548, 0.0
    %1553 = vadd.xlane.f32.xlu0 %v1552
    %v1554 = vpop.xlane.xlu0 %1553
    %v1555 = vmul.f32 %v1551, 0.032258064
    %v1556 = vmul.f32 %v1554, 0.032258064
    %v1557 = vrsqrt.pop %v1555
    %v1558 = vmul.f32 %v1557, %v1555
    %v1559 = vmul.f32 %v1558, %v1557
    %v1560 = vmul.f32 0.5, %v1559
    %v1561 = vsub.f32 1.5, %v1560
    %v1562 = vmul.f32 %v1557, %v1561
    %v1563 = vmul.f32 %v1555, %v1562
    %vm1564 = vcmp.eq.f32.partialorder %v1555, inf
    %v1565 = vsel %vm1564, %v1555, %v1563
    %vm1566 = vcmp.eq.f32.partialorder %v1555, 0.0
    %v1567 = vand.u32 %v1555, 2147483648
    %v1568 = vsel %vm1566, %v1567, %v1565
    %v1569 = vrsqrt.pop %v1556
    %v1570 = vmul.f32 %v1569, %v1556
    %v1571 = vmul.f32 %v1570, %v1569
    %v1572 = vmul.f32 0.5, %v1571
    %v1573 = vsub.f32 1.5, %v1572
    %v1574 = vmul.f32 %v1569, %v1573
    %v1575 = vmul.f32 %v1556, %v1574
    %vm1576 = vcmp.eq.f32.partialorder %v1556, inf
    %v1577 = vsel %vm1576, %v1556, %v1575
    %vm1578 = vcmp.eq.f32.partialorder %v1556, 0.0
    %v1579 = vand.u32 %v1556, 2147483648
    %v1580 = vsel %vm1578, %v1579, %v1577
    %v1581 = vadd.f32 %v1568, 1e-06
    %v1582 = vadd.f32 %v1580, 1e-06
    %v1583 = vrcp.pop %v1581
    %v1584 = vmul.f32 %v1581, %v1583
    %v1585 = vsub.f32 1.0, %v1584
    %v1586 = vmul.f32 %v1583, %v1585
    %v1587 = vadd.f32 %v1583, %v1586
    %vm1588 = vweird.f32 %v1581
    %vm1589 = vweird.f32 %v1583
    %vm1590 = vmor %vm1588, %vm1589
    %v1591 = vsel %vm1590, %v1583, %v1587
    %v1592 = vand.u32 2147483647, %v1581
    %vm1593 = vcmp.eq.f32.partialorder %v1592, 8.507059e+37
    %v1594 = vand.u32 %v1581, 2147483648
    %v1595 = vor.u32 1.1754944e-38, %v1594
    %v1596 = vsel %vm1593, %v1595, %v1591
    %v1597 = vmul.f32 1.0, %v1596
    %v1598 = vrcp.pop %v1582
    %v1599 = vmul.f32 %v1582, %v1598
    %v1600 = vsub.f32 1.0, %v1599
    %v1601 = vmul.f32 %v1598, %v1600
    %v1602 = vadd.f32 %v1598, %v1601
    %vm1603 = vweird.f32 %v1582
    %vm1604 = vweird.f32 %v1598
    %vm1605 = vmor %vm1603, %vm1604
    %v1606 = vsel %vm1605, %v1598, %v1602
    %v1607 = vand.u32 2147483647, %v1582
    %vm1608 = vcmp.eq.f32.partialorder %v1607, 8.507059e+37
    %v1609 = vand.u32 %v1582, 2147483648
    %v1610 = vor.u32 1.1754944e-38, %v1609
    %v1611 = vsel %vm1608, %v1610, %v1606
    %v1612 = vmul.f32 1.0, %v1611
    %v1613 = vperm.slane %v1535, 0
    %v1614 = vmul.f32 %v1613, %v1545
    %v1615 = vmul.f32 %v1613, %v1546
    %v1616 = vmul.f32 %v1614, %v1597
    %v1617 = vmul.f32 %v1615, %v1612
    %v1618 = vperm.slane %v1536, 0
    %v1619 = vadd.f32 %v1616, %v1618
    %v1620 = vadd.f32 %v1617, %v1618
    %v1621 = vld [vmem:[#allocation8 + $0x40] sm:$0xff]
    %v1622 = vld [vmem:[#allocation8 + $0x48] sm:$0xff]
    %v1623 = vld [vmem:[#allocation8 + $0x50] sm:$0xff]
    %v1624 = vld [vmem:[#allocation8 + $0x58] sm:$0xff]
    %v1625 = vld [vmem:[#allocation10 + $0x5] sm:$0x1]
    %v1626 = vperm.slane %v1625, 0
    %v1628 = vsel %vm115, %v1619, 0
    %v1631 = vsel %vm115, %v1620, 0
    %1633 = vmatpush.msra.mxu0 0.0
    %1634 = vmatpush.msra.mxu0 0.0
    %1635 = vmatpush.msra.mxu0 0.0
    %1636 = vmatpush.msra.mxu0 0.0
    %1637 = vmatpush.msra.mxu0 0.0
    %1638 = vmatpush.msra.mxu0 0.0
    %1639 = vmatpush.msra.mxu0 0.0
    %1640 = vmatpush.msra.mxu0 0.0
    %1641 = vmatpush.msra.mxu0 0.0
    %1642 = vmatpush.msra.mxu0 0.0
    %1643 = vmatpush.msra.mxu0 0.0
    %1644 = vmatpush.msra.mxu0 0.0
    %1645 = vmatpush.msra.mxu0 %v1624
    %1646 = vmatpush.msra.mxu0 %v1623
    %1647 = vmatpush.msra.mxu0 %v1622
    %1648 = vmatpush.msra.mxu0 %v1621
    %1649 = vmatmul.f32.gmra.mxu0 %v1628
    %v1650 = vpop.f32.mrf.mxu0
    %v1651 = vadd.f32 %v1626, %v1650
    %1652 = vmatmul.f32.gmra.mxu0 %v1631
    %v1653 = vpop.f32.mrf.mxu0
    %v1654 = vadd.f32 %v1626, %v1653
    %1655 = vdwg.mxu0
    %v1656 = vmax.f32 %v1651, 0.0
    %v1657 = vmax.f32 %v1654, 0.0
    %v1658 = vld [vmem:[#allocation8 + $0x60] sm:$0xff]
    %v1659 = vld [vmem:[#allocation8 + $0x68] sm:$0xff]
    %v1660 = vld [vmem:[#allocation8 + $0x70] sm:$0xff]
    %v1661 = vld [vmem:[#allocation8 + $0x78] sm:$0xff]
    %v1662 = vld [vmem:[#allocation8 + $0x80] sm:$0xff]
    %v1663 = vld [vmem:[#allocation8 + $0x88] sm:$0xff]
    %v1664 = vld [vmem:[#allocation8 + $0x90] sm:$0xff]
    %v1665 = vld [vmem:[#allocation8 + $0x98] sm:$0xff]
    %v1666 = vld [vmem:[#allocation10 + $0x6] sm:$0x1]
    %v1667 = vperm.slane %v1666, 0
    %vm1668 = vcmask 523264
    %v1670 = vsel %vm1668, %v1656, 0
    %v1673 = vsel %vm1668, %v1657, 0
    %1675 = vmatpush.msra.mxu0 0.0
    %1676 = vmatpush.msra.mxu0 0.0
    %1677 = vmatpush.msra.mxu0 0.0
    %1678 = vmatpush.msra.mxu0 0.0
    %1679 = vmatpush.msra.mxu0 0.0
    %1680 = vmatpush.msra.mxu0 0.0
    %1681 = vmatpush.msra.mxu0 0.0
    %1682 = vmatpush.msra.mxu0 0.0
    %1683 = vmatpush.msra.mxu0 %v1665
    %1684 = vmatpush.msra.mxu0 %v1664
    %1685 = vmatpush.msra.mxu0 %v1663
    %1686 = vmatpush.msra.mxu0 %v1662
    %1687 = vmatpush.msra.mxu0 %v1661
    %1688 = vmatpush.msra.mxu0 %v1660
    %1689 = vmatpush.msra.mxu0 %v1659
    %1690 = vmatpush.msra.mxu0 %v1658
    %1691 = vmatmul.f32.gmra.mxu0 %v1670
    %v1692 = vpop.f32.mrf.mxu0
    %v1693 = vadd.f32 %v1667, %v1692
    %1694 = vmatmul.f32.gmra.mxu0 %v1673
    %v1695 = vpop.f32.mrf.mxu0
    %v1696 = vadd.f32 %v1667, %v1695
    %1697 = vdwg.mxu0
    %v1698 = vadd.f32 %v1619, %v1693
    %v1699 = vadd.f32 %v1620, %v1696
    %v1700 = vld [vmem:[#allocation10 + $0xb] sm:$0x1]
    %v1701 = vld [vmem:[#allocation10 + $0xc] sm:$0x1]
    %v1702 = vsel %vm115, %v1698, 0.0
    %1703 = vadd.xlane.f32.xlu0 %v1702
    %v1704 = vpop.xlane.xlu0 %1703
    %v1705 = vsel %vm115, %v1699, 0.0
    %1706 = vadd.xlane.f32.xlu0 %v1705
    %v1707 = vpop.xlane.xlu0 %1706
    %v1708 = vmul.f32 %v1704, %v739
    %v1709 = vmul.f32 %v1707, %v739
    %v1710 = vsub.f32 %v1698, %v1708
    %v1711 = vsub.f32 %v1699, %v1709
    %v1712 = vmul.f32 %v1710, %v1710
    %v1713 = vmul.f32 %v1711, %v1711
    %v1714 = vsel %vm115, %v1712, 0.0
    %1715 = vadd.xlane.f32.xlu0 %v1714
    %v1716 = vpop.xlane.xlu0 %1715
    %v1717 = vsel %vm115, %v1713, 0.0
    %1718 = vadd.xlane.f32.xlu0 %v1717
    %v1719 = vpop.xlane.xlu0 %1718
    %v1720 = vmul.f32 %v1716, 0.032258064
    %v1721 = vmul.f32 %v1719, 0.032258064
    %v1722 = vrsqrt.pop %v1720
    %v1723 = vmul.f32 %v1722, %v1720
    %v1724 = vmul.f32 %v1723, %v1722
    %v1725 = vmul.f32 0.5, %v1724
    %v1726 = vsub.f32 1.5, %v1725
    %v1727 = vmul.f32 %v1722, %v1726
    %v1728 = vmul.f32 %v1720, %v1727
    %vm1729 = vcmp.eq.f32.partialorder %v1720, inf
    %v1730 = vsel %vm1729, %v1720, %v1728
    %vm1731 = vcmp.eq.f32.partialorder %v1720, 0.0
    %v1732 = vand.u32 %v1720, 2147483648
    %v1733 = vsel %vm1731, %v1732, %v1730
    %v1734 = vrsqrt.pop %v1721
    %v1735 = vmul.f32 %v1734, %v1721
    %v1736 = vmul.f32 %v1735, %v1734
    %v1737 = vmul.f32 0.5, %v1736
    %v1738 = vsub.f32 1.5, %v1737
    %v1739 = vmul.f32 %v1734, %v1738
    %v1740 = vmul.f32 %v1721, %v1739
    %vm1741 = vcmp.eq.f32.partialorder %v1721, inf
    %v1742 = vsel %vm1741, %v1721, %v1740
    %vm1743 = vcmp.eq.f32.partialorder %v1721, 0.0
    %v1744 = vand.u32 %v1721, 2147483648
    %v1745 = vsel %vm1743, %v1744, %v1742
    %v1746 = vadd.f32 %v1733, 1e-06
    %v1747 = vadd.f32 %v1745, 1e-06
    %v1748 = vrcp.pop %v1746
    %v1749 = vmul.f32 %v1746, %v1748
    %v1750 = vsub.f32 1.0, %v1749
    %v1751 = vmul.f32 %v1748, %v1750
    %v1752 = vadd.f32 %v1748, %v1751
    %vm1753 = vweird.f32 %v1746
    %vm1754 = vweird.f32 %v1748
    %vm1755 = vmor %vm1753, %vm1754
    %v1756 = vsel %vm1755, %v1748, %v1752
    %v1757 = vand.u32 2147483647, %v1746
    %vm1758 = vcmp.eq.f32.partialorder %v1757, 8.507059e+37
    %v1759 = vand.u32 %v1746, 2147483648
    %v1760 = vor.u32 1.1754944e-38, %v1759
    %v1761 = vsel %vm1758, %v1760, %v1756
    %v1762 = vmul.f32 1.0, %v1761
    %v1763 = vrcp.pop %v1747
    %v1764 = vmul.f32 %v1747, %v1763
    %v1765 = vsub.f32 1.0, %v1764
    %v1766 = vmul.f32 %v1763, %v1765
    %v1767 = vadd.f32 %v1763, %v1766
    %vm1768 = vweird.f32 %v1747
    %vm1769 = vweird.f32 %v1763
    %vm1770 = vmor %vm1768, %vm1769
    %v1771 = vsel %vm1770, %v1763, %v1767
    %v1772 = vand.u32 2147483647, %v1747
    %vm1773 = vcmp.eq.f32.partialorder %v1772, 8.507059e+37
    %v1774 = vand.u32 %v1747, 2147483648
    %v1775 = vor.u32 1.1754944e-38, %v1774
    %v1776 = vsel %vm1773, %v1775, %v1771
    %v1777 = vmul.f32 1.0, %v1776
    %v1778 = vperm.slane %v1700, 0
    %v1779 = vmul.f32 %v1778, %v1710
    %v1780 = vmul.f32 %v1778, %v1711
    %v1781 = vmul.f32 %v1779, %v1762
    %v1782 = vmul.f32 %v1780, %v1777
    %v1783 = vperm.slane %v1701, 0
    %v1784 = vadd.f32 %v1781, %v1783
    %v1785 = vadd.f32 %v1782, %v1783
    %1786 = vst.msk [vmem:[#allocation11] sm:$0xff] %vm115, %v1784
    %1787 = vst.msk [vmem:[#allocation11 + $0x8] sm:$0xff] %vm115, %v1785
    // Predicated region
    $region42: #{tpu_custom_call.1} parent=1 // pred_check
      _
    $region43: #{tpu_custom_call.1} parent=1 // pred_check_branch
      %1789 = sbr.rel (0) target = $region45
    $region44: #{tpu_custom_call.1} parent=1 // pred_region
      %1791 = vsyncadd [#allocation4], 0
      %s1792 = sshll.u32 [#allocation11], 4
      %s1793 = int_to_ptr.vmem [resolvable:$true] %s1792
      %s1794 = sshll.u32 %s5, 4
      %s1795 = int_to_ptr.hbm [resolvable:$true] %s1794
      %1800 = dma.vmem_to_hbm [thread:$0]  %s1793, 256, %s1795, [#allocation4], 128, 128, 8
    $region45: #{tpu_custom_call.1} parent=1 // pred_fallthru
      _
    // Predicated region
    $region46: #{tpu_custom_call.1} parent=1 // pred_check
      _
    $region47: #{tpu_custom_call.1} parent=1 // pred_check_branch
      %1802 = sbr.rel (0) target = $region49
    $region48: #{tpu_custom_call.1} parent=1 // pred_region
      %1804 = dma.done [#allocation4], 256
    $region49: #{tpu_custom_call.1} parent=1 // pred_fallthru
      _
    %1805 = vsyncpa [#allocation3], 1
    %1806 = vsyncpa [#allocation6], 1
    %1807 = vsyncpa [#allocation9], 1
    %1808 = vsyncpa [#allocation4], 1

</llo_original>
